<compile_context>
chip_gen: v6e
topology: v6e:2x2x1
jax: 0.10.0
libtpu: 0.0.40
codegen_flags: <defaults>
</compile_context>

<pallas_src>
import math

import jax
import jax.numpy as jnp
from jax.experimental import pallas as pl
from jax.experimental.pallas import tpu as pltpu


# ----------------------------------------------------------------------------- helpers
def _cdiv(a, b):
    return -(-a // b)


def _tpu_generation():
    """(vmem_capacity_bytes, two_tensorcores, scoped_vmem_default_bytes)."""
    kind = ""
    try:
        kind = jax.devices()[0].device_kind.lower()
    except Exception:
        pass
    vmem_cap = 128 << 20
    try:
        vmem_cap = int(pltpu.get_tpu_info().vmem_capacity_bytes)
    except Exception:
        pass
    small_vmem = vmem_cap <= (64 << 20)            # v7x-class part
    two_tc = small_vmem or ("v7" in kind)          # 2 TensorCores per chip
    if ("v6" in kind) or ("v7" in kind) or small_vmem:
        scoped_default = 32 << 20
    else:
        scoped_default = 16 << 20                  # v5e (and conservative fallback)
    return vmem_cap, two_tc, scoped_default


def _pick_tile_hw(hw, c, chp, itemsize, budget, max_tile=4096):
    """Largest lane-aligned (128-multiple) spatial tile within the VMEM budget."""
    if hw <= 128:
        return hw                                   # block == full dim (always legal)
    # double-buffered in+out tile columns + f32 intermediates (x upcast, y, h)
    per_lane = 4 * c * itemsize + 4 * (2 * c + chp)
    hw_ceil = _cdiv(hw, 128) * 128
    limit = min(max_tile, hw_ceil)
    tile = 128
    t = 256
    while t <= limit:
        if per_lane * t <= budget:
            tile = t
        t += 128
    return tile


def _even_out_grid(hw, tile, other_steps, two_tc):
    """On 2-TensorCore parts keep the total step count even so the parallel grid
    shards evenly across cores (this kernel is memory-bound => ~2x)."""
    if not two_tc or hw <= 128:
        return tile
    if (other_steps * _cdiv(hw, tile)) % 2 == 0:
        return tile
    t = tile - 128
    while t >= 128:
        if (other_steps * _cdiv(hw, t)) % 2 == 0:
            return t
        t -= 128
    return tile


# ----------------------------------------------------------------------------- kernel
def _adapter_kernel(rs_ref, x_ref, w1_ref, b1_ref, w2_ref, b2_ref, o_ref):
    """One (C, T) spatial tile of one modality:
         out = r * (W2 @ relu(W1 @ x + b1) + b2) + (1 - r) * x
    Channels-first orientation: C on sublanes, spatial columns on lanes, so the
    NCHW layout is consumed/produced directly and stores are lane-dense.
    The MXU runs in the activation dtype (weights pre-cast in the wrapper);
    accumulation is f32 via preferred_element_type."""
    mi = pl.program_id(0)                                      # modality index
    x = x_ref[...]                                             # (C, T) activation dtype
    h = jnp.dot(w1_ref[...], x, preferred_element_type=jnp.float32)       # (Ch, T) f32
    h = jnp.maximum(h + b1_ref[...], 0.0)
    y = jnp.dot(w2_ref[...], h.astype(w2_ref.dtype),
                preferred_element_type=jnp.float32)            # (C, T) f32
    y = y + b2_ref[...]
    r = rs_ref[mi]                                             # sigmoid hoisted to wrapper
    o_ref[...] = (r * y + (1.0 - r) * x.astype(jnp.float32)).astype(o_ref.dtype)


# ------------------------------------------------------------------------- pallas call
def _adapter_stacked(x, w1, b1, w2, b2, rs):
    """x: (M, BS, C, HW); weights stacked per modality (hidden width padded to chp).
    Returns (M, BS, C, HW) = r * MLP(columns) + (1 - r) * columns."""
    m, bs, c, hw = x.shape
    chp = w1.shape[1]
    itemsize = jnp.dtype(x.dtype).itemsize
    wsize = jnp.dtype(w1.dtype).itemsize

    vmem_cap, two_tc, scoped_default = _tpu_generation()
    small_vmem = vmem_cap <= (64 << 20)
    tile_budget = (14 << 20) if small_vmem else (36 << 20)
    tile = _pick_tile_hw(hw, c, chp, itemsize, tile_budget)
    tile = _even_out_grid(hw, tile, m * bs, two_tc)
    grid = (m, bs, _cdiv(hw, tile))

    io_bytes = 4 * c * tile * itemsize                 # double-buffered in + out tiles
    interm_bytes = 4 * (2 * c + chp) * tile            # f32 x (blend), h, y
    wblock_bytes = 2 * c * chp * wsize + (chp + c) * 4
    vmem_cap_limit = (40 << 20) if small_vmem else (96 << 20)

    def build(single_buffer_weights):
        wkw = ({"pipeline_mode": pl.Buffered(1)} if single_buffer_weights else {})
        wbufs = 1 if single_buffer_weights else 2
        need = int(1.25 * (io_bytes + interm_bytes + wbufs * wblock_bytes)) + (1 << 20)
        cp = {"dimension_semantics": ("parallel", "parallel", "parallel")}
        if need > scoped_default:
            limit = min(max(need, 32 << 20), vmem_cap_limit)
            cp["vmem_limit_bytes"] = int(max(limit, need))   # never below the real need
        return pl.pallas_call(
            _adapter_kernel,
            out_shape=jax.ShapeDtypeStruct((m, bs, c, hw), x.dtype),
            grid_spec=pltpu.PrefetchScalarGridSpec(
                num_scalar_prefetch=0,
                grid=grid,
                in_specs=[
                    pl.BlockSpec(memory_space=pltpu.MemorySpace.SMEM),   # r per modality (M,)
                    pl.BlockSpec((None, None, c, tile),
                                 lambda mi, bi, ti: (mi, bi, 0, ti)),    # x tile (C, T)
                    pl.BlockSpec((None, chp, c), lambda mi, bi, ti: (mi, 0, 0), **wkw),
                    pl.BlockSpec((None, chp, 1), lambda mi, bi, ti: (mi, 0, 0), **wkw),
                    pl.BlockSpec((None, c, chp), lambda mi, bi, ti: (mi, 0, 0), **wkw),
                    pl.BlockSpec((None, c, 1), lambda mi, bi, ti: (mi, 0, 0), **wkw),
                ],
                out_specs=pl.BlockSpec((None, None, c, tile),
                                       lambda mi, bi, ti: (mi, bi, 0, ti)),
            ),
            compiler_params=pltpu.CompilerParams(**cp),
        )

    try:
        return build(True)(rs, x, w1, b1, w2, b2)
    except Exception:
        # TODO(synk): pl.Buffered(1) (single-buffered resident weights) is not
        # available on every jaxlib; retry with default double buffering.
        return build(False)(rs, x, w1, b1, w2, b2)


# ------------------------------------------------------------------------- module glue
def _stack_adapter_params(plist, compute_dtype):
    """Stack per-modality adapter params; pad hidden width to a common multiple of 8.
    Zero-padded hidden rows are inert: ReLU(0*x + 0) = 0 times zero W2 columns."""
    ch_max = max(int(p["w1"].shape[0]) for p in plist)
    chp = max(8, _cdiv(ch_max, 8) * 8)

    def pad_rows(a):
        return jnp.pad(a, ((0, chp - a.shape[0]),) + ((0, 0),) * (a.ndim - 1))

    def pad_cols(a):
        return jnp.pad(a, ((0, 0), (0, chp - a.shape[1])))

    w1 = jnp.stack([pad_rows(p["w1"]) for p in plist]).astype(compute_dtype)         # (M,chp,C)
    b1 = jnp.stack([pad_rows(p["b1"].reshape(-1, 1)) for p in plist]).astype(jnp.float32)
    w2 = jnp.stack([pad_cols(p["w2"]) for p in plist]).astype(compute_dtype)          # (M,C,chp)
    b2 = jnp.stack([p["b2"].reshape(-1, 1) for p in plist]).astype(jnp.float32)       # (M,C,1)
    rs = jnp.stack([jax.nn.sigmoid(p["ratio_logit"].reshape(()).astype(jnp.float32))
                    for p in plist])                                                  # (M,)
    return w1, b1, w2, b2, rs


def init_params(input_channels, levels, modalities, reduction, initial_ratio=0.4, seed=0):
    """Parameter init mirroring the nn.Module shapes (PyTorch (out,in) Linear layout)."""
    key = jax.random.PRNGKey(seed)
    initial_logit = math.log(initial_ratio / (1.0 - initial_ratio))
    params = {}
    for level in levels:
        params[level] = {}
        for modality in modalities:
            c = input_channels[level]
            ch = max(1, c // reduction[modality])
            key, k1, k2, k3, k4 = jax.random.split(key, 5)
            params[level][modality] = {
                "w1": jax.random.normal(k1, (ch, c), jnp.float32) / math.sqrt(c),
                "b1": jax.random.normal(k2, (ch,), jnp.float32) * 0.01,
                "w2": jax.random.normal(k3, (c, ch), jnp.float32) / math.sqrt(ch),
                "b2": jax.random.normal(k4, (c,), jnp.float32) * 0.01,
                "ratio_logit": jnp.asarray(initial_logit, jnp.float32),
            }
    return params


def mlp_adapter_with_learnable_ratio_forward(src, params, levels, *,
                                             fuse_bytes_threshold=8 << 20):
    """src: {level: {modality: (BS, C, H, W)}} -> same structure (new dicts)."""
    out_src = {}
    for level, features in src.items():
        if level not in levels:
            out_src[level] = features
            continue
        mods = list(features.keys())
        same = (len({features[mo].shape for mo in mods}) == 1
                and len({jnp.dtype(features[mo].dtype) for mo in mods}) == 1)
        total_bytes = sum(int(features[mo].size) * jnp.dtype(features[mo].dtype).itemsize
                          for mo in mods)
        # Fuse all modalities of a level into one pallas_call when the feature
        # maps are small (launch/warm-up dominates and the jnp.stack copy is
        # negligible); otherwise run one call per modality (no extra HBM pass).
        if same and (len(mods) == 1 or total_bytes <= fuse_bytes_threshold):
            groups = [mods]
        else:
            groups = [[mo] for mo in mods]

        out_feats = {}
        for group in groups:
            feats = [features[mo] for mo in group]
            bs, c, h, w = feats[0].shape
            hw = h * w
            fdt = feats[0].dtype
            cdt = fdt if jnp.issubdtype(fdt, jnp.floating) else jnp.float32
            x = jnp.stack([f.reshape(bs, c, hw) for f in feats], axis=0).astype(cdt)
            w1, b1, w2, b2, rs = _stack_adapter_params(
                [params[level][mo] for mo in group], cdt)
            out = _adapter_stacked(x, w1, b1, w2, b2, rs)
            for i, mo in enumerate(group):
                out_feats[mo] = out[i].reshape(bs, c, h, w).astype(fdt)
        out_src[level] = out_feats
    return out_src


# ----------------------------------------------------------------- pure-JAX reference
def _reference_forward(src, params, levels):
    out_src = {}
    for level, features in src.items():
        if level not in levels:
            out_src[level] = features
            continue
        out_feats = {}
        for modality, feature in features.items():
            p = params[level][modality]
            bs, c, h, w = feature.shape
            fdt = feature.dtype
            cdt = fdt if jnp.issubdtype(fdt, jnp.floating) else jnp.float32
            x = feature.reshape(bs, c, h * w).transpose(0, 2, 1).astype(cdt)   # (BS,HW,C)
            w1 = p["w1"].astype(cdt)
            w2 = p["w2"].astype(cdt)
            hdn = jnp.dot(x, w1.T, preferred_element_type=jnp.float32) + p["b1"].astype(jnp.float32)
            hdn = jnp.maximum(hdn, 0.0)
            y = (jnp.dot(hdn.astype(cdt), w2.T, preferred_element_type=jnp.float32)
                 + p["b2"].astype(jnp.float32))
            r = jax.nn.sigmoid(p["ratio_logit"].astype(jnp.float32))
            out = r * y + (1.0 - r) * x.astype(jnp.float32)
            out = out.transpose(0, 2, 1).reshape(bs, c, h, w).astype(fdt)
            out_feats[modality] = out
        out_src[level] = out_feats
    return out_src


if __name__ == "__main__":
    levels = ["p3", "p4"]
    modalities = ["camera", "lidar"]
    input_channels = {"p3": 32, "p4": 64}
    spatial = {"p3": (16, 16), "p4": (8, 8)}
    reduction = {"camera": 4, "lidar": 8}
    BS = 2
    dtype = jnp.bfloat16

    params = init_params(input_channels, levels, modalities, reduction,
                         initial_ratio=0.4, seed=0)

    key = jax.random.PRNGKey(0)
    src = {}
    for level in levels:
        src[level] = {}
        h, w = spatial[level]
        for modality in modalities:
            key, sub = jax.random.split(key)
            src[level][modality] = jax.random.normal(
                sub, (BS, input_channels[level], h, w), jnp.float32).astype(dtype)

    out = mlp_adapter_with_learnable_ratio_forward(src, params, levels)
    out = jax.tree_util.tree_map(jax.block_until_ready, out)

    ref = _reference_forward(src, params, levels)
    for level in levels:
        for modality in modalities:
            a = out[level][modality].astype(jnp.float32)
            b = ref[level][modality].astype(jnp.float32)
            assert a.shape == src[level][modality].shape, (level, modality, a.shape)
            # both paths do exact bf16 products with f32 accumulation; tolerance
            # covers bf16 output quantization only.
            assert jnp.allclose(a, b, atol=1e-2, rtol=1e-2), (
                level, modality, float(jnp.max(jnp.abs(a - b))))

    print("KERNEL_OK")
</pallas_src>

<mosaic_0001>
module attributes {stable_mosaic.version = 11 : i64} {
  func.func @_adapter_kernel(%arg0: i32, %arg1: i32, %arg2: i32, %arg3: memref<2xf32, #tpu.memory_space<smem>>, %arg4: memref<1x1x32x256xbf16, #tpu.memory_space<vmem>>, %arg5: memref<1x8x32xbf16, #tpu.memory_space<vmem>>, %arg6: memref<1x8x1xf32, #tpu.memory_space<vmem>>, %arg7: memref<1x32x8xbf16, #tpu.memory_space<vmem>>, %arg8: memref<1x32x1xf32, #tpu.memory_space<vmem>>, %arg9: memref<1x1x32x256xbf16, #tpu.memory_space<vmem>>) attributes {dimension_semantics = [#tpu.dimension_semantics<parallel>, #tpu.dimension_semantics<parallel>, #tpu.dimension_semantics<parallel>], iteration_bounds = array<i64: 2, 2, 1>, scalar_prefetch = 0 : i64, scratch_operands = 0 : i64, tpu.core_type = #tpu.core_type<tc>, window_params = [{transform_indices = @transform_0, window_bounds = array<i64: 2>}, {transform_indices = @transform_1, window_bounds = array<i64: 1, 1, 32, 256>}, {pipeline_mode = #tpu.pipeline_mode<synchronous>, transform_indices = @transform_2, window_bounds = array<i64: 1, 8, 32>}, {pipeline_mode = #tpu.pipeline_mode<synchronous>, transform_indices = @transform_3, window_bounds = array<i64: 1, 8, 1>}, {pipeline_mode = #tpu.pipeline_mode<synchronous>, transform_indices = @transform_4, window_bounds = array<i64: 1, 32, 8>}, {pipeline_mode = #tpu.pipeline_mode<synchronous>, transform_indices = @transform_5, window_bounds = array<i64: 1, 32, 1>}, {transform_indices = @transform_6, window_bounds = array<i64: 1, 1, 32, 256>}]} {
    %c0 = arith.constant 0 : index
    %c0_0 = arith.constant 0 : index
    %c0_1 = arith.constant 0 : index
    %c0_2 = arith.constant 0 : index
    %0 = vector.load %arg4[%c0, %c0_0, %c0_1, %c0_2] : memref<1x1x32x256xbf16, #tpu.memory_space<vmem>>, vector<1x1x32x256xbf16>
    %1 = vector.shape_cast %0 : vector<1x1x32x256xbf16> to vector<32x256xbf16>
    %c0_3 = arith.constant 0 : index
    %c0_4 = arith.constant 0 : index
    %c0_5 = arith.constant 0 : index
    %2 = vector.load %arg5[%c0_3, %c0_4, %c0_5] : memref<1x8x32xbf16, #tpu.memory_space<vmem>>, vector<1x8x32xbf16>
    %3 = vector.shape_cast %2 : vector<1x8x32xbf16> to vector<8x32xbf16>
    %cst = arith.constant dense<0.000000e+00> : vector<8x256xf32>
    %4 = tpu.matmul %3, %1, %cst {dimension_numbers = #tpu.dot_dimension_numbers<[1], [0], [0], [1], [0, 0, 1, 1], [], []>} : vector<8x32xbf16>, vector<32x256xbf16>, vector<8x256xf32> -> vector<8x256xf32>
    %c0_6 = arith.constant 0 : index
    %c0_7 = arith.constant 0 : index
    %c0_8 = arith.constant 0 : index
    %5 = vector.load %arg6[%c0_6, %c0_7, %c0_8] : memref<1x8x1xf32, #tpu.memory_space<vmem>>, vector<1x8x1xf32>
    %6 = vector.shape_cast %5 : vector<1x8x1xf32> to vector<8x1xf32>
    %7 = vector.broadcast %6 : vector<8x1xf32> to vector<8x256xf32>
    %8 = arith.addf %4, %7 : vector<8x256xf32>
    %cst_9 = arith.constant 0.000000e+00 : f32
    %9 = vector.broadcast %cst_9 : f32 to vector<8x256xf32>
    %10 = arith.maximumf %8, %9 : vector<8x256xf32>
    %c0_10 = arith.constant 0 : index
    %c0_11 = arith.constant 0 : index
    %c0_12 = arith.constant 0 : index
    %11 = vector.load %arg7[%c0_10, %c0_11, %c0_12] : memref<1x32x8xbf16, #tpu.memory_space<vmem>>, vector<1x32x8xbf16>
    %12 = vector.shape_cast %11 : vector<1x32x8xbf16> to vector<32x8xbf16>
    %13 = arith.truncf %10 : vector<8x256xf32> to vector<8x256xbf16>
    %cst_13 = arith.constant dense<0.000000e+00> : vector<32x256xf32>
    %14 = tpu.matmul %12, %13, %cst_13 {dimension_numbers = #tpu.dot_dimension_numbers<[1], [0], [0], [1], [0, 0, 1, 1], [], []>} : vector<32x8xbf16>, vector<8x256xbf16>, vector<32x256xf32> -> vector<32x256xf32>
    %c0_14 = arith.constant 0 : index
    %c0_15 = arith.constant 0 : index
    %c0_16 = arith.constant 0 : index
    %15 = vector.load %arg8[%c0_14, %c0_15, %c0_16] : memref<1x32x1xf32, #tpu.memory_space<vmem>>, vector<1x32x1xf32>
    %16 = vector.shape_cast %15 : vector<1x32x1xf32> to vector<32x1xf32>
    %17 = vector.broadcast %16 : vector<32x1xf32> to vector<32x256xf32>
    %18 = arith.addf %14, %17 : vector<32x256xf32>
    %19 = arith.index_cast %arg0 : i32 to index
    %20 = memref.load %arg3[%19] : memref<2xf32, #tpu.memory_space<smem>>
    %21 = vector.broadcast %20 : f32 to vector<32x256xf32>
    %22 = arith.mulf %21, %18 : vector<32x256xf32>
    %cst_17 = arith.constant 1.000000e+00 : f32
    %23 = arith.subf %cst_17, %20 : f32
    %24 = arith.extf %1 : vector<32x256xbf16> to vector<32x256xf32>
    %25 = vector.broadcast %23 : f32 to vector<32x256xf32>
    %26 = arith.mulf %25, %24 : vector<32x256xf32>
    %27 = arith.addf %22, %26 : vector<32x256xf32>
    %28 = arith.truncf %27 : vector<32x256xf32> to vector<32x256xbf16>
    %c0_18 = arith.constant 0 : index
    %c0_19 = arith.constant 0 : index
    %c0_20 = arith.constant 0 : index
    %c0_21 = arith.constant 0 : index
    %29 = vector.load %arg9[%c0_18, %c0_19, %c0_20, %c0_21] : memref<1x1x32x256xbf16, #tpu.memory_space<vmem>>, vector<1x1x32x256xbf16>
    %30 = vector.shape_cast %29 : vector<1x1x32x256xbf16> to vector<32x256xbf16>
    %31 = vector.shape_cast %28 : vector<32x256xbf16> to vector<1x1x32x256xbf16>
    tpu.vector_store %arg9[%c0_18, %c0_19, %c0_20, %c0_21], %31 {strides = array<i32>} : memref<1x1x32x256xbf16, #tpu.memory_space<vmem>>, vector<1x1x32x256xbf16>,
    return
  }
  func.func @transform_0(%arg0: i32, %arg1: i32, %arg2: i32) -> i32 {
    %c0_i32 = arith.constant 0 : i32
    %c0_i32_0 = arith.constant 0 : i32
    return %c0_i32 : i32
  }
  func.func @transform_1(%arg0: i32, %arg1: i32, %arg2: i32) -> (i32, i32, i32, i32) {
    %c0_i32 = arith.constant 0 : i32
    %c0_i32_0 = arith.constant 0 : i32
    return %arg0, %arg1, %c0_i32, %arg2 : i32, i32, i32, i32
  }
  func.func @transform_2(%arg0: i32, %arg1: i32, %arg2: i32) -> (i32, i32, i32) {
    %c0_i32 = arith.constant 0 : i32
    %c0_i32_0 = arith.constant 0 : i32
    %c0_i32_1 = arith.constant 0 : i32
    return %arg0, %c0_i32, %c0_i32_0 : i32, i32, i32
  }
  func.func @transform_3(%arg0: i32, %arg1: i32, %arg2: i32) -> (i32, i32, i32) {
    %c0_i32 = arith.constant 0 : i32
    %c0_i32_0 = arith.constant 0 : i32
    %c0_i32_1 = arith.constant 0 : i32
    return %arg0, %c0_i32, %c0_i32_0 : i32, i32, i32
  }
  func.func @transform_4(%arg0: i32, %arg1: i32, %arg2: i32) -> (i32, i32, i32) {
    %c0_i32 = arith.constant 0 : i32
    %c0_i32_0 = arith.constant 0 : i32
    %c0_i32_1 = arith.constant 0 : i32
    return %arg0, %c0_i32, %c0_i32_0 : i32, i32, i32
  }
  func.func @transform_5(%arg0: i32, %arg1: i32, %arg2: i32) -> (i32, i32, i32) {
    %c0_i32 = arith.constant 0 : i32
    %c0_i32_0 = arith.constant 0 : i32
    %c0_i32_1 = arith.constant 0 : i32
    return %arg0, %c0_i32, %c0_i32_0 : i32, i32, i32
  }
  func.func @transform_6(%arg0: i32, %arg1: i32, %arg2: i32) -> (i32, i32, i32, i32) {
    %c0_i32 = arith.constant 0 : i32
    %c0_i32_0 = arith.constant 0 : i32
    return %arg0, %arg1, %c0_i32, %arg2 : i32, i32, i32, i32
  }
}

module attributes {stable_mosaic.version = 11 : i64} {
  func.func @_adapter_kernel(%arg0: i32, %arg1: i32, %arg2: i32, %arg3: memref<2xf32, #tpu.memory_space<smem>>, %arg4: memref<1x1x32x256xbf16, #tpu.memory_space<vmem>>, %arg5: memref<1x8x32xbf16, #tpu.memory_space<vmem>>, %arg6: memref<1x8x1xf32, #tpu.memory_space<vmem>>, %arg7: memref<1x32x8xbf16, #tpu.memory_space<vmem>>, %arg8: memref<1x32x1xf32, #tpu.memory_space<vmem>>, %arg9: memref<1x1x32x256xbf16, #tpu.memory_space<vmem>>) attributes {dimension_semantics = [#tpu.dimension_semantics<parallel>, #tpu.dimension_semantics<parallel>, #tpu.dimension_semantics<parallel>], iteration_bounds = array<i64: 2, 2, 1>, scalar_prefetch = 0 : i64, scratch_operands = 0 : i64, tpu.core_type = #tpu.core_type<tc>, window_params = [{transform_indices = @transform_0, window_bounds = array<i64: 2>}, {transform_indices = @transform_1, window_bounds = array<i64: 1, 1, 32, 256>}, {transform_indices = @transform_2, window_bounds = array<i64: 1, 8, 32>}, {transform_indices = @transform_3, window_bounds = array<i64: 1, 8, 1>}, {transform_indices = @transform_4, window_bounds = array<i64: 1, 32, 8>}, {transform_indices = @transform_5, window_bounds = array<i64: 1, 32, 1>}, {transform_indices = @transform_6, window_bounds = array<i64: 1, 1, 32, 256>}]} {
    %c0 = arith.constant 0 : index
    %c0_0 = arith.constant 0 : index
    %c0_1 = arith.constant 0 : index
    %c0_2 = arith.constant 0 : index
    %0 = vector.load %arg4[%c0, %c0_0, %c0_1, %c0_2] : memref<1x1x32x256xbf16, #tpu.memory_space<vmem>>, vector<1x1x32x256xbf16>
    %1 = vector.shape_cast %0 : vector<1x1x32x256xbf16> to vector<32x256xbf16>
    %c0_3 = arith.constant 0 : index
    %c0_4 = arith.constant 0 : index
    %c0_5 = arith.constant 0 : index
    %2 = vector.load %arg5[%c0_3, %c0_4, %c0_5] : memref<1x8x32xbf16, #tpu.memory_space<vmem>>, vector<1x8x32xbf16>
    %3 = vector.shape_cast %2 : vector<1x8x32xbf16> to vector<8x32xbf16>
    %cst = arith.constant dense<0.000000e+00> : vector<8x256xf32>
    %4 = tpu.matmul %3, %1, %cst {dimension_numbers = #tpu.dot_dimension_numbers<[1], [0], [0], [1], [0, 0, 1, 1], [], []>} : vector<8x32xbf16>, vector<32x256xbf16>, vector<8x256xf32> -> vector<8x256xf32>
    %c0_6 = arith.constant 0 : index
    %c0_7 = arith.constant 0 : index
    %c0_8 = arith.constant 0 : index
    %5 = vector.load %arg6[%c0_6, %c0_7, %c0_8] : memref<1x8x1xf32, #tpu.memory_space<vmem>>, vector<1x8x1xf32>
    %6 = vector.shape_cast %5 : vector<1x8x1xf32> to vector<8x1xf32>
    %7 = vector.broadcast %6 : vector<8x1xf32> to vector<8x256xf32>
    %8 = arith.addf %4, %7 : vector<8x256xf32>
    %cst_9 = arith.constant 0.000000e+00 : f32
    %9 = vector.broadcast %cst_9 : f32 to vector<8x256xf32>
    %10 = arith.maximumf %8, %9 : vector<8x256xf32>
    %c0_10 = arith.constant 0 : index
    %c0_11 = arith.constant 0 : index
    %c0_12 = arith.constant 0 : index
    %11 = vector.load %arg7[%c0_10, %c0_11, %c0_12] : memref<1x32x8xbf16, #tpu.memory_space<vmem>>, vector<1x32x8xbf16>
    %12 = vector.shape_cast %11 : vector<1x32x8xbf16> to vector<32x8xbf16>
    %13 = arith.truncf %10 : vector<8x256xf32> to vector<8x256xbf16>
    %cst_13 = arith.constant dense<0.000000e+00> : vector<32x256xf32>
    %14 = tpu.matmul %12, %13, %cst_13 {dimension_numbers = #tpu.dot_dimension_numbers<[1], [0], [0], [1], [0, 0, 1, 1], [], []>} : vector<32x8xbf16>, vector<8x256xbf16>, vector<32x256xf32> -> vector<32x256xf32>
    %c0_14 = arith.constant 0 : index
    %c0_15 = arith.constant 0 : index
    %c0_16 = arith.constant 0 : index
    %15 = vector.load %arg8[%c0_14, %c0_15, %c0_16] : memref<1x32x1xf32, #tpu.memory_space<vmem>>, vector<1x32x1xf32>
    %16 = vector.shape_cast %15 : vector<1x32x1xf32> to vector<32x1xf32>
    %17 = vector.broadcast %16 : vector<32x1xf32> to vector<32x256xf32>
    %18 = arith.addf %14, %17 : vector<32x256xf32>
    %19 = arith.index_cast %arg0 : i32 to index
    %20 = memref.load %arg3[%19] : memref<2xf32, #tpu.memory_space<smem>>
    %21 = vector.broadcast %20 : f32 to vector<32x256xf32>
    %22 = arith.mulf %21, %18 : vector<32x256xf32>
    %cst_17 = arith.constant 1.000000e+00 : f32
    %23 = arith.subf %cst_17, %20 : f32
    %24 = arith.extf %1 : vector<32x256xbf16> to vector<32x256xf32>
    %25 = vector.broadcast %23 : f32 to vector<32x256xf32>
    %26 = arith.mulf %25, %24 : vector<32x256xf32>
    %27 = arith.addf %22, %26 : vector<32x256xf32>
    %28 = arith.truncf %27 : vector<32x256xf32> to vector<32x256xbf16>
    %c0_18 = arith.constant 0 : index
    %c0_19 = arith.constant 0 : index
    %c0_20 = arith.constant 0 : index
    %c0_21 = arith.constant 0 : index
    %29 = vector.load %arg9[%c0_18, %c0_19, %c0_20, %c0_21] : memref<1x1x32x256xbf16, #tpu.memory_space<vmem>>, vector<1x1x32x256xbf16>
    %30 = vector.shape_cast %29 : vector<1x1x32x256xbf16> to vector<32x256xbf16>
    %31 = vector.shape_cast %28 : vector<32x256xbf16> to vector<1x1x32x256xbf16>
    tpu.vector_store %arg9[%c0_18, %c0_19, %c0_20, %c0_21], %31 {strides = array<i32>} : memref<1x1x32x256xbf16, #tpu.memory_space<vmem>>, vector<1x1x32x256xbf16>,
    return
  }
  func.func @transform_0(%arg0: i32, %arg1: i32, %arg2: i32) -> i32 {
    %c0_i32 = arith.constant 0 : i32
    %c0_i32_0 = arith.constant 0 : i32
    return %c0_i32 : i32
  }
  func.func @transform_1(%arg0: i32, %arg1: i32, %arg2: i32) -> (i32, i32, i32, i32) {
    %c0_i32 = arith.constant 0 : i32
    %c0_i32_0 = arith.constant 0 : i32
    return %arg0, %arg1, %c0_i32, %arg2 : i32, i32, i32, i32
  }
  func.func @transform_2(%arg0: i32, %arg1: i32, %arg2: i32) -> (i32, i32, i32) {
    %c0_i32 = arith.constant 0 : i32
    %c0_i32_0 = arith.constant 0 : i32
    %c0_i32_1 = arith.constant 0 : i32
    return %arg0, %c0_i32, %c0_i32_0 : i32, i32, i32
  }
  func.func @transform_3(%arg0: i32, %arg1: i32, %arg2: i32) -> (i32, i32, i32) {
    %c0_i32 = arith.constant 0 : i32
    %c0_i32_0 = arith.constant 0 : i32
    %c0_i32_1 = arith.constant 0 : i32
    return %arg0, %c0_i32, %c0_i32_0 : i32, i32, i32
  }
  func.func @transform_4(%arg0: i32, %arg1: i32, %arg2: i32) -> (i32, i32, i32) {
    %c0_i32 = arith.constant 0 : i32
    %c0_i32_0 = arith.constant 0 : i32
    %c0_i32_1 = arith.constant 0 : i32
    return %arg0, %c0_i32, %c0_i32_0 : i32, i32, i32
  }
  func.func @transform_5(%arg0: i32, %arg1: i32, %arg2: i32) -> (i32, i32, i32) {
    %c0_i32 = arith.constant 0 : i32
    %c0_i32_0 = arith.constant 0 : i32
    %c0_i32_1 = arith.constant 0 : i32
    return %arg0, %c0_i32, %c0_i32_0 : i32, i32, i32
  }
  func.func @transform_6(%arg0: i32, %arg1: i32, %arg2: i32) -> (i32, i32, i32, i32) {
    %c0_i32 = arith.constant 0 : i32
    %c0_i32_0 = arith.constant 0 : i32
    return %arg0, %arg1, %c0_i32, %arg2 : i32, i32, i32, i32
  }
}

</mosaic_0001>

<llo_original>
// kernel: tpu_custom_call.1
$region0: #{tpu_custom_call.1}
  #allocation0 [shape = 'u32[]', space=smem, size = 0x4, offset = 0x4, fixed_abs, tag = 'smem constant byte address 0x4 - core index']
  #allocation1 [shape = 'u32[144,128]{1,0:T(1,128)}', space=vmem, size = 0x12000, scoped, tag = 'internal scratch']
  %s0 = inlined_call_operand.vmem [shape: f32[2], index: 0, kind: input, shape index: {}]
  %s1 = inlined_call_operand.hbm [shape: bf16[2,2,32,256], index: 1, kind: input, shape index: {}]
  %s2 = inlined_call_operand.vmem [shape: bf16[2,8,32], index: 2, kind: input, shape index: {}]
  %s3 = inlined_call_operand.vmem [shape: f32[2,8,1], index: 3, kind: input, shape index: {}]
  %s4 = inlined_call_operand.vmem [shape: bf16[2,32,8], index: 4, kind: input, shape index: {}]
  %s5 = inlined_call_operand.vmem [shape: f32[2,32,1], index: 5, kind: input, shape index: {}]
  %s6 = inlined_call_operand.hbm [shape: bf16[2,2,32,256], index: 6, kind: output, shape index: {}]
  %s7 = sld [smem:[#allocation0]]
  $region65: #{tpu_custom_call.1} parent=0
    _
  %s9 = ssub.s32 1, %s7
  %s10 = scalar_select 0, %s9, %s7
  $region1: #{tpu_custom_call.1} parent=0
    #allocation2 [shape = 'u8[512]{0}', space=smem, size = 0x200, scoped, tag = 'input window, operand 0, single buffered']
    #allocation3 [shape = 's32[2]{0}', space=sflag, size = 0x8, scoped, tag = 'scoped memory for tpu_custom_call.1']
    #allocation4 [shape = 's32[2]{0}', space=sflag, size = 0x8, scoped, tag = 'scoped memory for tpu_custom_call.1']
    #allocation5 [shape = 's32[2]{0}', space=sflag, size = 0x8, scoped, tag = 'scoped memory for tpu_custom_call.1']
    #allocation6 [shape = 'u8[32768]{0}', space=vmem, size = 0x8000, scoped, tag = 'input window, operand 1']
    #allocation7 [shape = 'u8[32768]{0}', space=vmem, size = 0x8000, scoped, tag = 'output window, operand 0']
    %11 = vsyncpa [#allocation5], 0
    %12 = vsyncpa [#allocation3], 0
    %s13 = scalar_lea.sflag [#allocation3], 1
    %14 = vsyncpa %s13, 0
    %15 = vsyncpa [#allocation4], 0
    %s16 = scalar_lea.sflag [#allocation4], 1
    %17 = vsyncpa %s16, 0
    loop: start=0, step=1, limit=6
    $region2: #{tpu_custom_call.1} parent=1 // loop_pre_header
      _
    $region3: #{tpu_custom_call.1} parent=1 // loop_header
      %s19 = sphi 0, %s23
      %p20 = scmp.ge.s32.totalorder %s19, 6
      %s26 = sphi 0, %s45
      %s27 = sphi 0, %s41
      %s28 = sphi 0, %s37
      %s29 = sphi 0, %s26
      %s30 = sphi 0, %s27
      %s31 = sphi 0, %s28
      %s32 = sphi 0, %s29
      %s33 = sphi 0, %s30
      %s34 = sphi 0, %s31
      %s46 = sphi 0, %s46
      %s48 = sphi 0, %s46
      %s49 = sphi 0, %s48
      %s63 = sphi 0, %s49
      %s73 = sphi 0, %s75
      %s76 = sphi 0, %s73
      %s77 = sphi 0, %s76
      %s93 = sphi 0, %s77
      %s99 = sphi 0, %s101
      %s102 = sphi 0, %s99
      %s103 = sphi 0, %s102
      %s119 = sphi 0, %s103
      %s125 = sphi 0, %s127
      %s128 = sphi 0, %s125
      %s129 = sphi 0, %s128
      %s145 = sphi 0, %s129
      %s151 = sphi 0, %s153
      %s154 = sphi 0, %s151
      %s155 = sphi 0, %s154
      %s171 = sphi 0, %s155
      %s177 = sphi 0, %s179
      %s180 = sphi 0, %s177
      %s181 = sphi 0, %s180
      %s197 = sphi 0, %s181
      %s207 = sphi 0, %s209
      %s210 = sphi 0, %s207
      %s211 = sphi 0, %s210
      %s227 = sphi 0, %s211
    $region4: #{tpu_custom_call.1} parent=1 // loop_header_branch
      %22 = sbr.rel (%p20) target = $region8
    $region5: #{tpu_custom_call.1} parent=1 // loop_body
      %s24 = ssub.s32 %s19, 1
      %s25 = ssub.s32 %s19, 2
      %s35 = sadd.s32 1, %s28
      %p36 = scmp.ge.s32.totalorder %s35, 1
      %s37 = scalar_select %p36, 0, %s35
      %s38 = sadd.s32 1, %s27
      %s39 = scalar_select %p36, %s38, %s27
      %p40 = scmp.ge.s32.totalorder %s39, 2
      %s41 = scalar_select %p40, 0, %s39
      %s42 = sadd.s32 1, %s26
      %s43 = scalar_select %p40, %s42, %s26
      %p44 = scmp.ge.s32.totalorder %s43, 2
      %s45 = scalar_select %p44, 0, %s43
      %s47 = sadd.s32 %s46, 1
      %p50 = scmp.eq.s32.totalorder %s19, 3
      %p51 = scmp.ne.s32.totalorder %s46, %s48
      %p52 = scmp.eq.s32.totalorder %s19, 0
      %p53 = por %p51, %p52
      %p54 = scmp.ne.s32.totalorder %s46, %s48
      %p55 = scmp.eq.s32.totalorder %s24, 3
      %p56 = por %p54, %p55
      %p57 = scmp.ne.s32.totalorder %s48, %s49
      %p58 = scmp.eq.s32.totalorder %s24, 0
      %p59 = por %p57, %p58
      %p60 = scmp.ne.s32.totalorder %s48, %s49
      %p61 = scmp.eq.s32.totalorder %s25, 3
      %p62 = por %p60, %p61
      %p64 = scmp.ne.s32.totalorder %s49, %s63
      %p65 = scmp.eq.s32.totalorder %s25, 0
      %p66 = por %p64, %p65
      %s67 = ssub.s32 %s26, %s45
      %s68 = ssub.s32 %s27, %s41
      %s69 = sor.u32 %s67, %s68
      %s70 = ssub.s32 %s28, %s37
      %s71 = sor.u32 %s69, %s70
      %p72 = scmp.eq.s32.totalorder %s71, 0
      %s74 = sadd.s32 %s73, 1
      %s75 = scalar_select %p72, %s73, %s74
      %p78 = pneg %p72
      %p79 = scmp.eq.s32.totalorder %s19, 3
      %p80 = por %p78, %p79
      %p81 = scmp.ne.s32.totalorder %s73, %s76
      %p82 = scmp.eq.s32.totalorder %s19, 0
      %p83 = por %p81, %p82
      %p84 = scmp.ne.s32.totalorder %s73, %s76
      %p85 = scmp.eq.s32.totalorder %s24, 3
      %p86 = por %p84, %p85
      %p87 = scmp.ne.s32.totalorder %s76, %s77
      %p88 = scmp.eq.s32.totalorder %s24, 0
      %p89 = por %p87, %p88
      %p90 = scmp.ne.s32.totalorder %s76, %s77
      %p91 = scmp.eq.s32.totalorder %s25, 3
      %p92 = por %p90, %p91
      %p94 = scmp.ne.s32.totalorder %s77, %s93
      %p95 = scmp.eq.s32.totalorder %s25, 0
      %p96 = por %p94, %p95
      %s97 = ssub.s32 %s26, %s45
      %p98 = scmp.eq.s32.totalorder %s97, 0
      %s100 = sadd.s32 %s99, 1
      %s101 = scalar_select %p98, %s99, %s100
      %p104 = pneg %p98
      %p105 = scmp.eq.s32.totalorder %s19, 3
      %p106 = por %p104, %p105
      %p107 = scmp.ne.s32.totalorder %s99, %s102
      %p108 = scmp.eq.s32.totalorder %s19, 0
      %p109 = por %p107, %p108
      %p110 = scmp.ne.s32.totalorder %s99, %s102
      %p111 = scmp.eq.s32.totalorder %s24, 3
      %p112 = por %p110, %p111
      %p113 = scmp.ne.s32.totalorder %s102, %s103
      %p114 = scmp.eq.s32.totalorder %s24, 0
      %p115 = por %p113, %p114
      %p116 = scmp.ne.s32.totalorder %s102, %s103
      %p117 = scmp.eq.s32.totalorder %s25, 3
      %p118 = por %p116, %p117
      %p120 = scmp.ne.s32.totalorder %s103, %s119
      %p121 = scmp.eq.s32.totalorder %s25, 0
      %p122 = por %p120, %p121
      %s123 = ssub.s32 %s26, %s45
      %p124 = scmp.eq.s32.totalorder %s123, 0
      %s126 = sadd.s32 %s125, 1
      %s127 = scalar_select %p124, %s125, %s126
      %p130 = pneg %p124
      %p131 = scmp.eq.s32.totalorder %s19, 3
      %p132 = por %p130, %p131
      %p133 = scmp.ne.s32.totalorder %s125, %s128
      %p134 = scmp.eq.s32.totalorder %s19, 0
      %p135 = por %p133, %p134
      %p136 = scmp.ne.s32.totalorder %s125, %s128
      %p137 = scmp.eq.s32.totalorder %s24, 3
      %p138 = por %p136, %p137
      %p139 = scmp.ne.s32.totalorder %s128, %s129
      %p140 = scmp.eq.s32.totalorder %s24, 0
      %p141 = por %p139, %p140
      %p142 = scmp.ne.s32.totalorder %s128, %s129
      %p143 = scmp.eq.s32.totalorder %s25, 3
      %p144 = por %p142, %p143
      %p146 = scmp.ne.s32.totalorder %s129, %s145
      %p147 = scmp.eq.s32.totalorder %s25, 0
      %p148 = por %p146, %p147
      %s149 = ssub.s32 %s26, %s45
      %p150 = scmp.eq.s32.totalorder %s149, 0
      %s152 = sadd.s32 %s151, 1
      %s153 = scalar_select %p150, %s151, %s152
      %p156 = pneg %p150
      %p157 = scmp.eq.s32.totalorder %s19, 3
      %p158 = por %p156, %p157
      %p159 = scmp.ne.s32.totalorder %s151, %s154
      %p160 = scmp.eq.s32.totalorder %s19, 0
      %p161 = por %p159, %p160
      %p162 = scmp.ne.s32.totalorder %s151, %s154
      %p163 = scmp.eq.s32.totalorder %s24, 3
      %p164 = por %p162, %p163
      %p165 = scmp.ne.s32.totalorder %s154, %s155
      %p166 = scmp.eq.s32.totalorder %s24, 0
      %p167 = por %p165, %p166
      %p168 = scmp.ne.s32.totalorder %s154, %s155
      %p169 = scmp.eq.s32.totalorder %s25, 3
      %p170 = por %p168, %p169
      %p172 = scmp.ne.s32.totalorder %s155, %s171
      %p173 = scmp.eq.s32.totalorder %s25, 0
      %p174 = por %p172, %p173
      %s175 = ssub.s32 %s26, %s45
      %p176 = scmp.eq.s32.totalorder %s175, 0
      %s178 = sadd.s32 %s177, 1
      %s179 = scalar_select %p176, %s177, %s178
      %p182 = pneg %p176
      %p183 = scmp.eq.s32.totalorder %s19, 3
      %p184 = por %p182, %p183
      %p185 = scmp.ne.s32.totalorder %s177, %s180
      %p186 = scmp.eq.s32.totalorder %s19, 0
      %p187 = por %p185, %p186
      %p188 = scmp.ne.s32.totalorder %s177, %s180
      %p189 = scmp.eq.s32.totalorder %s24, 3
      %p190 = por %p188, %p189
      %p191 = scmp.ne.s32.totalorder %s180, %s181
      %p192 = scmp.eq.s32.totalorder %s24, 0
      %p193 = por %p191, %p192
      %p194 = scmp.ne.s32.totalorder %s180, %s181
      %p195 = scmp.eq.s32.totalorder %s25, 3
      %p196 = por %p194, %p195
      %p198 = scmp.ne.s32.totalorder %s181, %s197
      %p199 = scmp.eq.s32.totalorder %s25, 0
      %p200 = por %p198, %p199
      %s201 = ssub.s32 %s26, %s45
      %s202 = ssub.s32 %s27, %s41
      %s203 = sor.u32 %s201, %s202
      %s204 = ssub.s32 %s28, %s37
      %s205 = sor.u32 %s203, %s204
      %p206 = scmp.eq.s32.totalorder %s205, 0
      %s208 = sadd.s32 %s207, 1
      %s209 = scalar_select %p206, %s207, %s208
      %p212 = pneg %p206
      %p213 = scmp.eq.s32.totalorder %s19, 3
      %p214 = por %p212, %p213
      %p215 = scmp.ne.s32.totalorder %s207, %s210
      %p216 = scmp.eq.s32.totalorder %s19, 0
      %p217 = por %p215, %p216
      %p218 = scmp.ne.s32.totalorder %s207, %s210
      %p219 = scmp.eq.s32.totalorder %s24, 3
      %p220 = por %p218, %p219
      %p221 = scmp.ne.s32.totalorder %s210, %s211
      %p222 = scmp.eq.s32.totalorder %s24, 0
      %p223 = por %p221, %p222
      %p224 = scmp.ne.s32.totalorder %s210, %s211
      %p225 = scmp.eq.s32.totalorder %s25, 3
      %p226 = por %p224, %p225
      %p228 = scmp.ne.s32.totalorder %s211, %s227
      %p229 = scmp.eq.s32.totalorder %s25, 0
      %p230 = por %p228, %p229
      %p231 = scmp.le.s32.totalorder 1, %s19
      %p232 = scmp.lt.s32.totalorder %s19, 5
      %p233 = pnand %p231, %p232
      %p234 = pneg %p233
      // Predicated region
      $region9: #{tpu_custom_call.1} parent=5 // pred_check
        _
      $region10: #{tpu_custom_call.1} parent=5 // pred_check_branch
        %236 = sbr.rel (%p233) target = $region12
      $region11: #{tpu_custom_call.1} parent=5 // pred_region
        %s237 = ssub.s32 %s19, 1
        // Predicated region
        $region13: #{tpu_custom_call.1} parent=11 // pred_check
          %p238 = pneg %p59
        $region14: #{tpu_custom_call.1} parent=11 // pred_check_branch
          %240 = sbr.rel (%p238) target = $region16
        $region15: #{tpu_custom_call.1} parent=11 // pred_region
          %s242 = ssub.s32 16, 16
          %243 = vsyncadd [#allocation5], %s242
          %s245 = sshll.u32 %s0, 4
          %s246 = int_to_ptr.vmem [resolvable:$true] %s245
          %248 = dma.vmem_to_smem %s246, 16, [#allocation2], [#allocation5]
        $region16: #{tpu_custom_call.1} parent=11 // pred_fallthru
          _
        // Predicated region
        $region17: #{tpu_custom_call.1} parent=11 // pred_check
          %p249 = pneg %p115
        $region18: #{tpu_custom_call.1} parent=11 // pred_check_branch
          %251 = sbr.rel (%p249) target = $region20
        $region19: #{tpu_custom_call.1} parent=11 // pred_region
          %p252 = scmp.lt.s32.totalorder %s29, 1
          %s253 = scalar_select %p252, %s29, 1
          %s254 = smul.addr %s253, 4
          %s255 = scalar_lea.vmem %s2, %s254
        $region20: #{tpu_custom_call.1} parent=11 // pred_fallthru
          _
        // Predicated region
        $region21: #{tpu_custom_call.1} parent=11 // pred_check
          %p256 = pneg %p141
        $region22: #{tpu_custom_call.1} parent=11 // pred_check_branch
          %258 = sbr.rel (%p256) target = $region24
        $region23: #{tpu_custom_call.1} parent=11 // pred_region
          %p259 = scmp.lt.s32.totalorder %s29, 1
          %s260 = scalar_select %p259, %s29, 1
          %s261 = smul.addr %s260, 8
          %s262 = scalar_lea.vmem %s3, %s261
        $region24: #{tpu_custom_call.1} parent=11 // pred_fallthru
          _
        // Predicated region
        $region25: #{tpu_custom_call.1} parent=11 // pred_check
          %p263 = pneg %p167
        $region26: #{tpu_custom_call.1} parent=11 // pred_check_branch
          %265 = sbr.rel (%p263) target = $region28
        $region27: #{tpu_custom_call.1} parent=11 // pred_region
          %p266 = scmp.lt.s32.totalorder %s29, 1
          %s267 = scalar_select %p266, %s29, 1
          %s268 = smul.addr %s267, 4
          %s269 = smul.addr %s268, 4
          %s270 = scalar_lea.vmem %s4, %s269
        $region28: #{tpu_custom_call.1} parent=11 // pred_fallthru
          _
        // Predicated region
        $region29: #{tpu_custom_call.1} parent=11 // pred_check
          %p271 = pneg %p193
        $region30: #{tpu_custom_call.1} parent=11 // pred_check_branch
          %273 = sbr.rel (%p271) target = $region32
        $region31: #{tpu_custom_call.1} parent=11 // pred_region
          %p274 = scmp.lt.s32.totalorder %s29, 1
          %s275 = scalar_select %p274, %s29, 1
          %s276 = smul.addr %s275, 4
          %s277 = smul.addr %s276, 8
          %s278 = scalar_lea.vmem %s5, %s277
        $region32: #{tpu_custom_call.1} parent=11 // pred_fallthru
          _
      $region12: #{tpu_custom_call.1} parent=5 // pred_fallthru
        _
      %p279 = scmp.lt.s32.totalorder %s19, 4
      // Predicated region
      $region33: #{tpu_custom_call.1} parent=5 // pred_check
        %p280 = pneg %p279
      $region34: #{tpu_custom_call.1} parent=5 // pred_check_branch
        %282 = sbr.rel (%p280) target = $region36
      $region35: #{tpu_custom_call.1} parent=5 // pred_region
        // Predicated region
        $region37: #{tpu_custom_call.1} parent=35 // pred_check
          %p283 = pneg %p83
        $region38: #{tpu_custom_call.1} parent=35 // pred_check_branch
          %285 = sbr.rel (%p283) target = $region40
        $region39: #{tpu_custom_call.1} parent=35 // pred_region
          %s286 = sand.u32 %s73, 1
          %s287 = scalar_lea.sflag [#allocation3], %s286
          %s288 = sand.u32 %s73, 1
          %s289 = smul.addr %s288, 32
          %s290 = scalar_lea.vmem [#allocation6], %s289
          %s291 = smul.u32 2, %s28
          %s293 = ssub.s32 512, 512
          %294 = vsyncadd %s287, %s293
          %s295 = smul.addr %s27, 8
          %s296 = sadd.s32 %s291, %s295
          %s297 = smul.addr %s26, 16
          %s298 = sadd.s32 %s296, %s297
          %s299 = smul.addr %s298, 64
          %s300 = scalar_lea.hbm %s1, %s299
          %s301 = sshll.u32 %s290, 4
          %s302 = int_to_ptr.vmem [resolvable:$true] %s301
          %307 = dma.hbm_to_vmem [thread:$0]  %s300, 512, %s302, %s287, 128, 128, 8
        $region40: #{tpu_custom_call.1} parent=35 // pred_fallthru
          _
      $region36: #{tpu_custom_call.1} parent=5 // pred_fallthru
        _
      %p308 = scmp.le.s32.totalorder 1, %s19
      %p309 = scmp.lt.s32.totalorder %s19, 5
      %p310 = pnand %p308, %p309
      %p311 = pneg %p310
      // Predicated region
      $region41: #{tpu_custom_call.1} parent=5 // pred_check
        _
      $region42: #{tpu_custom_call.1} parent=5 // pred_check_branch
        %313 = sbr.rel (%p310) target = $region44
      $region43: #{tpu_custom_call.1} parent=5 // pred_region
        %s314 = ssub.s32 %s19, 1
        // Predicated region
        $region45: #{tpu_custom_call.1} parent=43 // pred_check
          %p315 = pneg %p59
        $region46: #{tpu_custom_call.1} parent=43 // pred_check_branch
          %317 = sbr.rel (%p315) target = $region48
        $region47: #{tpu_custom_call.1} parent=43 // pred_region
          %318 = dma.done [#allocation5], 16
        $region48: #{tpu_custom_call.1} parent=43 // pred_fallthru
          _
        %s319 = sand.u32 %s76, 1
        %s320 = scalar_lea.sflag [#allocation3], %s319
        %s321 = sand.u32 %s76, 1
        %s322 = smul.addr %s321, 32
        %s323 = scalar_lea.vmem [#allocation6], %s322
        // Predicated region
        $region49: #{tpu_custom_call.1} parent=43 // pred_check
          %p324 = pneg %p89
        $region50: #{tpu_custom_call.1} parent=43 // pred_check_branch
          %326 = sbr.rel (%p324) target = $region52
        $region51: #{tpu_custom_call.1} parent=43 // pred_region
          %327 = dma.done %s320, 512
        $region52: #{tpu_custom_call.1} parent=43 // pred_fallthru
          _
        %328 = sfence
        %p329 = pneg %p59
        %p330 = pneg %p56
        %s331 = sand.u32 %s76, 1
        %s332 = scalar_lea.sflag [#allocation3], %s331
        %s333 = sand.u32 %s76, 1
        %s334 = smul.addr %s333, 32
        %s335 = scalar_lea.vmem [#allocation6], %s334
        %p336 = pneg %p89
        %p337 = pneg %p86
        %p338 = scmp.lt.s32.totalorder %s29, 1
        %s339 = scalar_select %p338, %s29, 1
        %s340 = smul.addr %s339, 4
        %s341 = scalar_lea.vmem %s2, %s340
        %p342 = pneg %p115
        %p343 = pneg %p112
        %p344 = scmp.lt.s32.totalorder %s29, 1
        %s345 = scalar_select %p344, %s29, 1
        %s346 = smul.addr %s345, 8
        %s347 = scalar_lea.vmem %s3, %s346
        %p348 = pneg %p141
        %p349 = pneg %p138
        %p350 = scmp.lt.s32.totalorder %s29, 1
        %s351 = scalar_select %p350, %s29, 1
        %s352 = smul.addr %s351, 4
        %s353 = smul.addr %s352, 4
        %s354 = scalar_lea.vmem %s4, %s353
        %p355 = pneg %p167
        %p356 = pneg %p164
        %p357 = scmp.lt.s32.totalorder %s29, 1
        %s358 = scalar_select %p357, %s29, 1
        %s359 = smul.addr %s358, 4
        %s360 = smul.addr %s359, 8
        %s361 = scalar_lea.vmem %s5, %s360
        %p362 = pneg %p193
        %p363 = pneg %p190
        %p364 = pneg %p223
        %p365 = pneg %p220
        %s366 = sand.u32 %s210, 1
        %s367 = scalar_lea.sflag [#allocation4], %s366
        %s368 = sand.u32 %s210, 1
        %s369 = smul.addr %s368, 32
        %s370 = scalar_lea.vmem [#allocation7], %s369
        %s371 = smul.u32 2, %s31
        %p372 = scmp.lt.s32.totalorder %s29, 1
        %s373 = scalar_select %p372, %s29, 1
        %s374 = smul.addr %s373, 4
        %s375 = scalar_lea.vmem %s2, %s374
        %p376 = scmp.lt.s32.totalorder %s29, 1
        %s377 = scalar_select %p376, %s29, 1
        %s378 = smul.addr %s377, 8
        %s379 = scalar_lea.vmem %s3, %s378
        %p380 = scmp.lt.s32.totalorder %s29, 1
        %s381 = scalar_select %p380, %s29, 1
        %s382 = smul.addr %s381, 4
        %s383 = smul.addr %s382, 4
        %s384 = scalar_lea.vmem %s4, %s383
        %p385 = scmp.lt.s32.totalorder %s29, 1
        %s386 = scalar_select %p385, %s29, 1
        %s387 = smul.addr %s386, 4
        %s388 = smul.addr %s387, 8
        %s389 = scalar_lea.vmem %s5, %s388
        %s390 = smul.u32 2, %s31
        %v392 = vld [vmem:[%s323] sm:$0xff]
        %v393 = vld [vmem:[%s323 + $0x8] sm:$0xff]
        %v394 = vld [vmem:[%s323 + $0x10] sm:$0xff]
        %v395 = vld [vmem:[%s323 + $0x18] sm:$0xff]
        %v396 = vld [vmem:[%s375] sm:$0xf]
        %v397 = vld [vmem:[%s379] sm:$0xff]
        %399 = vset.pattern.permute.xlu0 0
        %400 = vperm.xlu0 %399, %v397
        %v401 = vpop.permute.xlu0 %400
        %v407 = vunpack.c.l.b16 %v392
        %v408 = vunpack.c.h.b16 %v392
        %v409 = vunpack.c.l.b16 %v393
        %v410 = vunpack.c.h.b16 %v393
        %v411 = vunpack.c.l.b16 %v394
        %v412 = vunpack.c.h.b16 %v394
        %v413 = vunpack.c.l.b16 %v395
        %v414 = vunpack.c.h.b16 %v395
        %v415 = vpack.c.b16 %v409, %v407
        %v416 = vpack.c.b16 %v410, %v408
        %v417 = vpack.c.b16 %v413, %v411
        %v418 = vpack.c.b16 %v414, %v412
        %vm423 = vcmask 261120
        %v425 = vsel %vm423, %v396, 0
        %427 = vmatprep.subr.bf16.mxu0 0
        %428 = vmatpush1.bf16.msra.mxu0 0
        %429 = vmatprep.subr.bf16.mxu0 0
        %430 = vmatpush1.bf16.msra.mxu0 0
        %431 = vmatprep.subr.bf16.mxu0 0
        %432 = vmatpush1.bf16.msra.mxu0 0
        %433 = vmatprep.subr.bf16.mxu0 0
        %434 = vmatpush1.bf16.msra.mxu0 0
        %435 = vmatprep.subr.bf16.mxu0 0
        %436 = vmatpush1.bf16.msra.mxu0 0
        %437 = vmatprep.subr.bf16.mxu0 0
        %438 = vmatpush1.bf16.msra.mxu0 0
        %439 = vmatprep.subr.bf16.mxu0 %v418
        %440 = vmatpush1.bf16.msra.mxu0 %v417
        %441 = vmatprep.subr.bf16.mxu0 %v416
        %442 = vmatpush1.bf16.msra.mxu0 %v415
        %443 = vmatprep.subr.bf16.mxu0 0
        %444 = vmatpush2.bf16.msra.mxu0 0
        %445 = vmatprep.subr.bf16.mxu0 0
        %446 = vmatpush2.bf16.msra.mxu0 0
        %447 = vmatprep.subr.bf16.mxu0 0
        %448 = vmatpush2.bf16.msra.mxu0 0
        %449 = vmatprep.subr.bf16.mxu0 0
        %450 = vmatpush2.bf16.msra.mxu0 0
        %451 = vmatprep.subr.bf16.mxu0 0
        %452 = vmatpush2.bf16.msra.mxu0 0
        %453 = vmatprep.subr.bf16.mxu0 0
        %454 = vmatpush2.bf16.msra.mxu0 0
        %455 = vmatprep.subr.bf16.mxu0 0
        %456 = vmatpush2.bf16.msra.mxu0 0
        %457 = vmatprep.subr.bf16.mxu0 0
        %458 = vmatpush2.bf16.msra.mxu0 0
        %459 = vmatprep.mubr.bf16.mxu0 0
        %460 = vmatmul.mubr.bf16.gmra.mxu0 %v425
        %v461 = vpop.f32.mrf.mxu0
        %v462 = vadd.f32 %v401, %v461
        %v463 = vpop.f32.mrf.mxu0
        %v464 = vadd.f32 %v401, %v463
        %v465 = vpop.f32.mrf.mxu0
        %v466 = vpop.f32.mrf.mxu0
        %467 = vdwg.mxu0
        %v468 = vmax.f32 %v462, 0.0
        %v469 = vmax.f32 %v464, 0.0
        %v470 = vld [vmem:[%s384] sm:$0xf]
        %v471 = vld [vmem:[%s384 + $0x4] sm:$0xf]
        %v472 = vld [vmem:[%s384 + $0x8] sm:$0xf]
        %v473 = vld [vmem:[%s384 + $0xc] sm:$0xf]
        %v474 = vpack.c.bf16 %v468, %v468
        %v475 = vpack.c.bf16 %v469, %v469
        %v476 = vld [vmem:[%s389] sm:$0xff]
        %v477 = vld [vmem:[%s389 + $0x8] sm:$0xff]
        %v478 = vld [vmem:[%s389 + $0x10] sm:$0xff]
        %v479 = vld [vmem:[%s389 + $0x18] sm:$0xff]
        %481 = vset.pattern.permute.xlu0 0
        %482 = vperm.xlu0 %481, %v476
        %v483 = vpop.permute.xlu0 %482
        %486 = vset.pattern.permute.xlu0 0
        %487 = vperm.xlu0 %486, %v477
        %v488 = vpop.permute.xlu0 %487
        %491 = vset.pattern.permute.xlu0 0
        %492 = vperm.xlu0 %491, %v478
        %v493 = vpop.permute.xlu0 %492
        %496 = vset.pattern.permute.xlu0 0
        %497 = vperm.xlu0 %496, %v479
        %v498 = vpop.permute.xlu0 %497
        %v504 = vunpack.c.l.b16 %v470
        %v505 = vunpack.c.l.b16 %v471
        %v506 = vunpack.c.l.b16 %v472
        %v507 = vunpack.c.l.b16 %v473
        %v508 = vpack.c.b16 %v505, %v504
        %v509 = vpack.c.b16 %v507, %v506
        %vm510 = vcmask 64512
        %v512 = vsel %vm510, %v508, 0
        %v515 = vsel %vm510, %v509, 0
        %vm517 = vcmask 1043456
        %v519 = vsel %vm517, %v474, 0
        %v522 = vsel %vm517, %v475, 0
        %524 = vmatprep.subr.bf16.mxu0 0
        %525 = vmatpush1.bf16.msra.mxu0 0
        %526 = vmatprep.subr.bf16.mxu0 0
        %527 = vmatpush1.bf16.msra.mxu0 0
        %528 = vmatprep.subr.bf16.mxu0 0
        %529 = vmatpush1.bf16.msra.mxu0 0
        %530 = vmatprep.subr.bf16.mxu0 0
        %531 = vmatpush1.bf16.msra.mxu0 0
        %532 = vmatprep.subr.bf16.mxu0 0
        %533 = vmatpush1.bf16.msra.mxu0 0
        %534 = vmatprep.subr.bf16.mxu0 0
        %535 = vmatpush1.bf16.msra.mxu0 0
        %536 = vmatprep.subr.bf16.mxu0 0
        %537 = vmatpush1.bf16.msra.mxu0 0
        %538 = vmatprep.subr.bf16.mxu0 %v522
        %539 = vmatpush1.bf16.msra.mxu0 %v519
        %540 = vmatprep.subr.bf16.mxu0 0
        %541 = vmatpush2.bf16.msra.mxu0 0
        %542 = vmatprep.subr.bf16.mxu0 0
        %543 = vmatpush2.bf16.msra.mxu0 0
        %544 = vmatprep.subr.bf16.mxu0 0
        %545 = vmatpush2.bf16.msra.mxu0 0
        %546 = vmatprep.subr.bf16.mxu0 0
        %547 = vmatpush2.bf16.msra.mxu0 0
        %548 = vmatprep.subr.bf16.mxu0 0
        %549 = vmatpush2.bf16.msra.mxu0 0
        %550 = vmatprep.subr.bf16.mxu0 0
        %551 = vmatpush2.bf16.msra.mxu0 0
        %552 = vmatprep.subr.bf16.mxu0 0
        %553 = vmatpush2.bf16.msra.mxu0 0
        %554 = vmatprep.subr.bf16.mxu0 0
        %555 = vmatpush2.bf16.msra.mxu0 0
        %556 = vmatprep.mubr.bf16.mxu0 0
        %557 = vmatmul.mubr.bf16.gmra.mxu0 %v512
        %v558 = vpop.f32.mrf.mxu0
        %v559 = vadd.f32 %v483, %v558
        %v560 = vpop.f32.mrf.mxu0
        %v561 = vadd.f32 %v483, %v560
        %v562 = vpop.f32.mrf.mxu0
        %v563 = vadd.f32 %v488, %v562
        %v564 = vpop.f32.mrf.mxu0
        %v565 = vadd.f32 %v488, %v564
        %566 = vmatprep.mubr.bf16.mxu0 0
        %567 = vmatmul.mubr.bf16.gmra.mxu0 %v515
        %v568 = vpop.f32.mrf.mxu0
        %v569 = vadd.f32 %v493, %v568
        %v570 = vpop.f32.mrf.mxu0
        %v571 = vadd.f32 %v493, %v570
        %v572 = vpop.f32.mrf.mxu0
        %v573 = vadd.f32 %v498, %v572
        %v574 = vpop.f32.mrf.mxu0
        %v575 = vadd.f32 %v498, %v574
        %576 = vdwg.mxu0
        %s577 = sld [smem:[#allocation2 + %s29]]
        %v578 = vstv %s577
        %v579 = vmul.f32 %v578, %v559
        %v580 = vmul.f32 %v578, %v561
        %v581 = vmul.f32 %v578, %v563
        %v582 = vmul.f32 %v578, %v565
        %v583 = vmul.f32 %v578, %v569
        %v584 = vmul.f32 %v578, %v571
        %v585 = vmul.f32 %v578, %v573
        %v586 = vmul.f32 %v578, %v575
        %s587 = ssub.f32 1.0, %s577
        %v588 = vunpack.c.l.bf16 %v392
        %v589 = vunpack.c.h.bf16 %v392
        %v590 = vunpack.c.l.bf16 %v393
        %v591 = vunpack.c.h.bf16 %v393
        %v592 = vunpack.c.l.bf16 %v394
        %v593 = vunpack.c.h.bf16 %v394
        %v594 = vunpack.c.l.bf16 %v395
        %v595 = vunpack.c.h.bf16 %v395
        %v596 = vstv %s587
        %v597 = vmul.f32 %v596, %v588
        %v598 = vmul.f32 %v596, %v589
        %v599 = vmul.f32 %v596, %v590
        %v600 = vmul.f32 %v596, %v591
        %v601 = vmul.f32 %v596, %v592
        %v602 = vmul.f32 %v596, %v593
        %v603 = vmul.f32 %v596, %v594
        %v604 = vmul.f32 %v596, %v595
        %v605 = vadd.f32 %v579, %v597
        %v606 = vadd.f32 %v580, %v598
        %v607 = vadd.f32 %v581, %v599
        %v608 = vadd.f32 %v582, %v600
        %v609 = vadd.f32 %v583, %v601
        %v610 = vadd.f32 %v584, %v602
        %v611 = vadd.f32 %v585, %v603
        %v612 = vadd.f32 %v586, %v604
        %v613 = vpack.c.bf16 %v607, %v605
        %v614 = vpack.c.bf16 %v608, %v606
        %v615 = vpack.c.bf16 %v611, %v609
        %v616 = vpack.c.bf16 %v612, %v610
        %v621 = vunpack.c.l.b16 %v613
        %v622 = vunpack.c.l.b16 %v614
        %v623 = vunpack.c.h.b16 %v613
        %v624 = vunpack.c.h.b16 %v614
        %v625 = vunpack.c.l.b16 %v615
        %v626 = vunpack.c.l.b16 %v616
        %v627 = vunpack.c.h.b16 %v615
        %v628 = vunpack.c.h.b16 %v616
        %v629 = vpack.c.b16 %v622, %v621
        %v630 = vpack.c.b16 %v624, %v623
        %v631 = vpack.c.b16 %v626, %v625
        %v632 = vpack.c.b16 %v628, %v627
        %637 = vst [vmem:[%s370] sm:$0xff] %v629
        %638 = vst [vmem:[%s370 + $0x8] sm:$0xff] %v630
        %639 = vst [vmem:[%s370 + $0x10] sm:$0xff] %v631
        %640 = vst [vmem:[%s370 + $0x18] sm:$0xff] %v632
        %s641 = sand.u32 %s210, 1
        %s642 = scalar_lea.sflag [#allocation4], %s641
        %s643 = sand.u32 %s210, 1
        %s644 = smul.addr %s643, 32
        %s645 = scalar_lea.vmem [#allocation7], %s644
        // Predicated region
        $region53: #{tpu_custom_call.1} parent=43 // pred_check
          %p646 = pneg %p220
        $region54: #{tpu_custom_call.1} parent=43 // pred_check_branch
          %648 = sbr.rel (%p646) target = $region56
        $region55: #{tpu_custom_call.1} parent=43 // pred_region
          %s649 = smul.u32 2, %s31
          %s651 = ssub.s32 512, 512
          %652 = vsyncadd %s642, %s651
          %s653 = smul.addr %s30, 8
          %s654 = sadd.s32 %s649, %s653
          %s655 = smul.addr %s29, 16
          %s656 = sadd.s32 %s654, %s655
          %s657 = smul.addr %s656, 64
          %s658 = scalar_lea.hbm %s6, %s657
          %s659 = sshll.u32 %s645, 4
          %s660 = int_to_ptr.vmem [resolvable:$true] %s659
          %665 = dma.vmem_to_hbm [thread:$0]  %s660, 512, %s658, %s642, 128, 128, 8
        $region56: #{tpu_custom_call.1} parent=43 // pred_fallthru
          _
      $region44: #{tpu_custom_call.1} parent=5 // pred_fallthru
        _
      %p666 = scmp.le.s32.totalorder 2, %s19
      // Predicated region
      $region57: #{tpu_custom_call.1} parent=5 // pred_check
        %p667 = pneg %p666
      $region58: #{tpu_custom_call.1} parent=5 // pred_check_branch
        %669 = sbr.rel (%p667) target = $region60
      $region59: #{tpu_custom_call.1} parent=5 // pred_region
        %s670 = ssub.s32 %s19, 2
        // Predicated region
        $region61: #{tpu_custom_call.1} parent=59 // pred_check
          %p671 = pneg %p226
        $region62: #{tpu_custom_call.1} parent=59 // pred_check_branch
          %673 = sbr.rel (%p671) target = $region64
        $region63: #{tpu_custom_call.1} parent=59 // pred_region
          %s674 = sand.u32 %s211, 1
          %s675 = scalar_lea.sflag [#allocation4], %s674
          %s676 = sand.u32 %s211, 1
          %s677 = smul.addr %s676, 32
          %s678 = scalar_lea.vmem [#allocation7], %s677
          %679 = dma.done %s675, 512
        $region64: #{tpu_custom_call.1} parent=59 // pred_fallthru
          _
      $region60: #{tpu_custom_call.1} parent=5 // pred_fallthru
        _
    $region6: #{tpu_custom_call.1} parent=1 // loop_footer
      %s23 = sadd.s32 1, %s19
    $region7: #{tpu_custom_call.1} parent=1 // loop_footer_branch
      %18 = sbr.rel target = $region3
    $region8: #{tpu_custom_call.1} parent=1 // loop_exit
      _
    %680 = vsyncpa [#allocation3], 1
    %s681 = scalar_lea.sflag [#allocation3], 1
    %682 = vsyncpa %s681, 1
    %683 = vsyncpa [#allocation4], 1
    %s684 = scalar_lea.sflag [#allocation4], 1
    %685 = vsyncpa %s684, 1
    %686 = vsyncpa [#allocation5], 1
    %s687 = scalar_lea.sflag [#allocation5], 1
    %688 = vsyncpa %s687, 1

// kernel: tpu_custom_call.1
$region0: #{tpu_custom_call.1}
  #allocation0 [shape = 'u32[]', space=smem, size = 0x4, offset = 0x4, fixed_abs, tag = 'smem constant byte address 0x4 - core index']
  #allocation1 [shape = 'u32[144,128]{1,0:T(1,128)}', space=vmem, size = 0x12000, scoped, tag = 'internal scratch']
  %s0 = inlined_call_operand.vmem [shape: f32[2], index: 0, kind: input, shape index: {}]
  %s1 = inlined_call_operand.hbm [shape: bf16[2,2,32,256], index: 1, kind: input, shape index: {}]
  %s2 = inlined_call_operand.vmem [shape: bf16[2,8,32], index: 2, kind: input, shape index: {}]
  %s3 = inlined_call_operand.vmem [shape: f32[2,8,1], index: 3, kind: input, shape index: {}]
  %s4 = inlined_call_operand.vmem [shape: bf16[2,32,8], index: 4, kind: input, shape index: {}]
  %s5 = inlined_call_operand.vmem [shape: f32[2,32,1], index: 5, kind: input, shape index: {}]
  %s6 = inlined_call_operand.hbm [shape: bf16[2,2,32,256], index: 6, kind: output, shape index: {}]
  %s7 = sld [smem:[#allocation0]]
  $region65: #{tpu_custom_call.1} parent=0
    _
  %s9 = ssub.s32 1, %s7
  %s10 = scalar_select 0, %s9, %s7
  $region1: #{tpu_custom_call.1} parent=0
    #allocation2 [shape = 'u8[512]{0}', space=smem, size = 0x200, scoped, tag = 'input window, operand 0, single buffered']
    #allocation3 [shape = 's32[2]{0}', space=sflag, size = 0x8, scoped, tag = 'scoped memory for tpu_custom_call.1']
    #allocation4 [shape = 's32[2]{0}', space=sflag, size = 0x8, scoped, tag = 'scoped memory for tpu_custom_call.1']
    #allocation5 [shape = 's32[2]{0}', space=sflag, size = 0x8, scoped, tag = 'scoped memory for tpu_custom_call.1']
    #allocation6 [shape = 'u8[32768]{0}', space=vmem, size = 0x8000, scoped, tag = 'input window, operand 1']
    #allocation7 [shape = 'u8[32768]{0}', space=vmem, size = 0x8000, scoped, tag = 'output window, operand 0']
    %11 = vsyncpa [#allocation5], 0
    %12 = vsyncpa [#allocation3], 0
    %s13 = scalar_lea.sflag [#allocation3], 1
    %14 = vsyncpa %s13, 0
    %15 = vsyncpa [#allocation4], 0
    %s16 = scalar_lea.sflag [#allocation4], 1
    %17 = vsyncpa %s16, 0
    loop: start=0, step=1, limit=6
    $region2: #{tpu_custom_call.1} parent=1 // loop_pre_header
      _
    $region3: #{tpu_custom_call.1} parent=1 // loop_header
      %s19 = sphi 0, %s23
      %p20 = scmp.ge.s32.totalorder %s19, 6
      %s26 = sphi 0, %s45
      %s27 = sphi 0, %s41
      %s28 = sphi 0, %s37
      %s29 = sphi 0, %s26
      %s30 = sphi 0, %s27
      %s31 = sphi 0, %s28
      %s32 = sphi 0, %s29
      %s33 = sphi 0, %s30
      %s34 = sphi 0, %s31
      %s46 = sphi 0, %s46
      %s48 = sphi 0, %s46
      %s49 = sphi 0, %s48
      %s63 = sphi 0, %s49
      %s73 = sphi 0, %s75
      %s76 = sphi 0, %s73
      %s77 = sphi 0, %s76
      %s93 = sphi 0, %s77
      %s99 = sphi 0, %s101
      %s102 = sphi 0, %s99
      %s103 = sphi 0, %s102
      %s119 = sphi 0, %s103
      %s125 = sphi 0, %s127
      %s128 = sphi 0, %s125
      %s129 = sphi 0, %s128
      %s145 = sphi 0, %s129
      %s151 = sphi 0, %s153
      %s154 = sphi 0, %s151
      %s155 = sphi 0, %s154
      %s171 = sphi 0, %s155
      %s177 = sphi 0, %s179
      %s180 = sphi 0, %s177
      %s181 = sphi 0, %s180
      %s197 = sphi 0, %s181
      %s207 = sphi 0, %s209
      %s210 = sphi 0, %s207
      %s211 = sphi 0, %s210
      %s227 = sphi 0, %s211
    $region4: #{tpu_custom_call.1} parent=1 // loop_header_branch
      %22 = sbr.rel (%p20) target = $region8
    $region5: #{tpu_custom_call.1} parent=1 // loop_body
      %s24 = ssub.s32 %s19, 1
      %s25 = ssub.s32 %s19, 2
      %s35 = sadd.s32 1, %s28
      %p36 = scmp.ge.s32.totalorder %s35, 1
      %s37 = scalar_select %p36, 0, %s35
      %s38 = sadd.s32 1, %s27
      %s39 = scalar_select %p36, %s38, %s27
      %p40 = scmp.ge.s32.totalorder %s39, 2
      %s41 = scalar_select %p40, 0, %s39
      %s42 = sadd.s32 1, %s26
      %s43 = scalar_select %p40, %s42, %s26
      %p44 = scmp.ge.s32.totalorder %s43, 2
      %s45 = scalar_select %p44, 0, %s43
      %s47 = sadd.s32 %s46, 1
      %p50 = scmp.eq.s32.totalorder %s19, 3
      %p51 = scmp.ne.s32.totalorder %s46, %s48
      %p52 = scmp.eq.s32.totalorder %s19, 0
      %p53 = por %p51, %p52
      %p54 = scmp.ne.s32.totalorder %s46, %s48
      %p55 = scmp.eq.s32.totalorder %s24, 3
      %p56 = por %p54, %p55
      %p57 = scmp.ne.s32.totalorder %s48, %s49
      %p58 = scmp.eq.s32.totalorder %s24, 0
      %p59 = por %p57, %p58
      %p60 = scmp.ne.s32.totalorder %s48, %s49
      %p61 = scmp.eq.s32.totalorder %s25, 3
      %p62 = por %p60, %p61
      %p64 = scmp.ne.s32.totalorder %s49, %s63
      %p65 = scmp.eq.s32.totalorder %s25, 0
      %p66 = por %p64, %p65
      %s67 = ssub.s32 %s26, %s45
      %s68 = ssub.s32 %s27, %s41
      %s69 = sor.u32 %s67, %s68
      %s70 = ssub.s32 %s28, %s37
      %s71 = sor.u32 %s69, %s70
      %p72 = scmp.eq.s32.totalorder %s71, 0
      %s74 = sadd.s32 %s73, 1
      %s75 = scalar_select %p72, %s73, %s74
      %p78 = pneg %p72
      %p79 = scmp.eq.s32.totalorder %s19, 3
      %p80 = por %p78, %p79
      %p81 = scmp.ne.s32.totalorder %s73, %s76
      %p82 = scmp.eq.s32.totalorder %s19, 0
      %p83 = por %p81, %p82
      %p84 = scmp.ne.s32.totalorder %s73, %s76
      %p85 = scmp.eq.s32.totalorder %s24, 3
      %p86 = por %p84, %p85
      %p87 = scmp.ne.s32.totalorder %s76, %s77
      %p88 = scmp.eq.s32.totalorder %s24, 0
      %p89 = por %p87, %p88
      %p90 = scmp.ne.s32.totalorder %s76, %s77
      %p91 = scmp.eq.s32.totalorder %s25, 3
      %p92 = por %p90, %p91
      %p94 = scmp.ne.s32.totalorder %s77, %s93
      %p95 = scmp.eq.s32.totalorder %s25, 0
      %p96 = por %p94, %p95
      %s97 = ssub.s32 %s26, %s45
      %p98 = scmp.eq.s32.totalorder %s97, 0
      %s100 = sadd.s32 %s99, 1
      %s101 = scalar_select %p98, %s99, %s100
      %p104 = pneg %p98
      %p105 = scmp.eq.s32.totalorder %s19, 3
      %p106 = por %p104, %p105
      %p107 = scmp.ne.s32.totalorder %s99, %s102
      %p108 = scmp.eq.s32.totalorder %s19, 0
      %p109 = por %p107, %p108
      %p110 = scmp.ne.s32.totalorder %s99, %s102
      %p111 = scmp.eq.s32.totalorder %s24, 3
      %p112 = por %p110, %p111
      %p113 = scmp.ne.s32.totalorder %s102, %s103
      %p114 = scmp.eq.s32.totalorder %s24, 0
      %p115 = por %p113, %p114
      %p116 = scmp.ne.s32.totalorder %s102, %s103
      %p117 = scmp.eq.s32.totalorder %s25, 3
      %p118 = por %p116, %p117
      %p120 = scmp.ne.s32.totalorder %s103, %s119
      %p121 = scmp.eq.s32.totalorder %s25, 0
      %p122 = por %p120, %p121
      %s123 = ssub.s32 %s26, %s45
      %p124 = scmp.eq.s32.totalorder %s123, 0
      %s126 = sadd.s32 %s125, 1
      %s127 = scalar_select %p124, %s125, %s126
      %p130 = pneg %p124
      %p131 = scmp.eq.s32.totalorder %s19, 3
      %p132 = por %p130, %p131
      %p133 = scmp.ne.s32.totalorder %s125, %s128
      %p134 = scmp.eq.s32.totalorder %s19, 0
      %p135 = por %p133, %p134
      %p136 = scmp.ne.s32.totalorder %s125, %s128
      %p137 = scmp.eq.s32.totalorder %s24, 3
      %p138 = por %p136, %p137
      %p139 = scmp.ne.s32.totalorder %s128, %s129
      %p140 = scmp.eq.s32.totalorder %s24, 0
      %p141 = por %p139, %p140
      %p142 = scmp.ne.s32.totalorder %s128, %s129
      %p143 = scmp.eq.s32.totalorder %s25, 3
      %p144 = por %p142, %p143
      %p146 = scmp.ne.s32.totalorder %s129, %s145
      %p147 = scmp.eq.s32.totalorder %s25, 0
      %p148 = por %p146, %p147
      %s149 = ssub.s32 %s26, %s45
      %p150 = scmp.eq.s32.totalorder %s149, 0
      %s152 = sadd.s32 %s151, 1
      %s153 = scalar_select %p150, %s151, %s152
      %p156 = pneg %p150
      %p157 = scmp.eq.s32.totalorder %s19, 3
      %p158 = por %p156, %p157
      %p159 = scmp.ne.s32.totalorder %s151, %s154
      %p160 = scmp.eq.s32.totalorder %s19, 0
      %p161 = por %p159, %p160
      %p162 = scmp.ne.s32.totalorder %s151, %s154
      %p163 = scmp.eq.s32.totalorder %s24, 3
      %p164 = por %p162, %p163
      %p165 = scmp.ne.s32.totalorder %s154, %s155
      %p166 = scmp.eq.s32.totalorder %s24, 0
      %p167 = por %p165, %p166
      %p168 = scmp.ne.s32.totalorder %s154, %s155
      %p169 = scmp.eq.s32.totalorder %s25, 3
      %p170 = por %p168, %p169
      %p172 = scmp.ne.s32.totalorder %s155, %s171
      %p173 = scmp.eq.s32.totalorder %s25, 0
      %p174 = por %p172, %p173
      %s175 = ssub.s32 %s26, %s45
      %p176 = scmp.eq.s32.totalorder %s175, 0
      %s178 = sadd.s32 %s177, 1
      %s179 = scalar_select %p176, %s177, %s178
      %p182 = pneg %p176
      %p183 = scmp.eq.s32.totalorder %s19, 3
      %p184 = por %p182, %p183
      %p185 = scmp.ne.s32.totalorder %s177, %s180
      %p186 = scmp.eq.s32.totalorder %s19, 0
      %p187 = por %p185, %p186
      %p188 = scmp.ne.s32.totalorder %s177, %s180
      %p189 = scmp.eq.s32.totalorder %s24, 3
      %p190 = por %p188, %p189
      %p191 = scmp.ne.s32.totalorder %s180, %s181
      %p192 = scmp.eq.s32.totalorder %s24, 0
      %p193 = por %p191, %p192
      %p194 = scmp.ne.s32.totalorder %s180, %s181
      %p195 = scmp.eq.s32.totalorder %s25, 3
      %p196 = por %p194, %p195
      %p198 = scmp.ne.s32.totalorder %s181, %s197
      %p199 = scmp.eq.s32.totalorder %s25, 0
      %p200 = por %p198, %p199
      %s201 = ssub.s32 %s26, %s45
      %s202 = ssub.s32 %s27, %s41
      %s203 = sor.u32 %s201, %s202
      %s204 = ssub.s32 %s28, %s37
      %s205 = sor.u32 %s203, %s204
      %p206 = scmp.eq.s32.totalorder %s205, 0
      %s208 = sadd.s32 %s207, 1
      %s209 = scalar_select %p206, %s207, %s208
      %p212 = pneg %p206
      %p213 = scmp.eq.s32.totalorder %s19, 3
      %p214 = por %p212, %p213
      %p215 = scmp.ne.s32.totalorder %s207, %s210
      %p216 = scmp.eq.s32.totalorder %s19, 0
      %p217 = por %p215, %p216
      %p218 = scmp.ne.s32.totalorder %s207, %s210
      %p219 = scmp.eq.s32.totalorder %s24, 3
      %p220 = por %p218, %p219
      %p221 = scmp.ne.s32.totalorder %s210, %s211
      %p222 = scmp.eq.s32.totalorder %s24, 0
      %p223 = por %p221, %p222
      %p224 = scmp.ne.s32.totalorder %s210, %s211
      %p225 = scmp.eq.s32.totalorder %s25, 3
      %p226 = por %p224, %p225
      %p228 = scmp.ne.s32.totalorder %s211, %s227
      %p229 = scmp.eq.s32.totalorder %s25, 0
      %p230 = por %p228, %p229
      %p231 = scmp.le.s32.totalorder 1, %s19
      %p232 = scmp.lt.s32.totalorder %s19, 5
      %p233 = pnand %p231, %p232
      %p234 = pneg %p233
      // Predicated region
      $region9: #{tpu_custom_call.1} parent=5 // pred_check
        _
      $region10: #{tpu_custom_call.1} parent=5 // pred_check_branch
        %236 = sbr.rel (%p233) target = $region12
      $region11: #{tpu_custom_call.1} parent=5 // pred_region
        %s237 = ssub.s32 %s19, 1
        // Predicated region
        $region13: #{tpu_custom_call.1} parent=11 // pred_check
          %p238 = pneg %p59
        $region14: #{tpu_custom_call.1} parent=11 // pred_check_branch
          %240 = sbr.rel (%p238) target = $region16
        $region15: #{tpu_custom_call.1} parent=11 // pred_region
          %s242 = ssub.s32 16, 16
          %243 = vsyncadd [#allocation5], %s242
          %s245 = sshll.u32 %s0, 4
          %s246 = int_to_ptr.vmem [resolvable:$true] %s245
          %248 = dma.vmem_to_smem %s246, 16, [#allocation2], [#allocation5]
        $region16: #{tpu_custom_call.1} parent=11 // pred_fallthru
          _
      $region12: #{tpu_custom_call.1} parent=5 // pred_fallthru
        _
      %p249 = scmp.lt.s32.totalorder %s19, 4
      // Predicated region
      $region17: #{tpu_custom_call.1} parent=5 // pred_check
        %p250 = pneg %p249
      $region18: #{tpu_custom_call.1} parent=5 // pred_check_branch
        %252 = sbr.rel (%p250) target = $region20
      $region19: #{tpu_custom_call.1} parent=5 // pred_region
        // Predicated region
        $region21: #{tpu_custom_call.1} parent=19 // pred_check
          %p253 = pneg %p83
        $region22: #{tpu_custom_call.1} parent=19 // pred_check_branch
          %255 = sbr.rel (%p253) target = $region24
        $region23: #{tpu_custom_call.1} parent=19 // pred_region
          %s256 = sand.u32 %s73, 1
          %s257 = scalar_lea.sflag [#allocation3], %s256
          %s258 = sand.u32 %s73, 1
          %s259 = smul.addr %s258, 32
          %s260 = scalar_lea.vmem [#allocation6], %s259
          %s261 = smul.u32 2, %s28
          %s263 = ssub.s32 512, 512
          %264 = vsyncadd %s257, %s263
          %s265 = smul.addr %s27, 8
          %s266 = sadd.s32 %s261, %s265
          %s267 = smul.addr %s26, 16
          %s268 = sadd.s32 %s266, %s267
          %s269 = smul.addr %s268, 64
          %s270 = scalar_lea.hbm %s1, %s269
          %s271 = sshll.u32 %s260, 4
          %s272 = int_to_ptr.vmem [resolvable:$true] %s271
          %277 = dma.hbm_to_vmem [thread:$0]  %s270, 512, %s272, %s257, 128, 128, 8
        $region24: #{tpu_custom_call.1} parent=19 // pred_fallthru
          _
        // Predicated region
        $region25: #{tpu_custom_call.1} parent=19 // pred_check
          %p278 = pneg %p109
        $region26: #{tpu_custom_call.1} parent=19 // pred_check_branch
          %280 = sbr.rel (%p278) target = $region28
        $region27: #{tpu_custom_call.1} parent=19 // pred_region
          %p281 = scmp.lt.s32.totalorder %s26, 1
          %s282 = scalar_select %p281, %s26, 1
          %s283 = smul.addr %s282, 4
          %s284 = scalar_lea.vmem %s2, %s283
        $region28: #{tpu_custom_call.1} parent=19 // pred_fallthru
          _
        // Predicated region
        $region29: #{tpu_custom_call.1} parent=19 // pred_check
          %p285 = pneg %p135
        $region30: #{tpu_custom_call.1} parent=19 // pred_check_branch
          %287 = sbr.rel (%p285) target = $region32
        $region31: #{tpu_custom_call.1} parent=19 // pred_region
          %p288 = scmp.lt.s32.totalorder %s26, 1
          %s289 = scalar_select %p288, %s26, 1
          %s290 = smul.addr %s289, 8
          %s291 = scalar_lea.vmem %s3, %s290
        $region32: #{tpu_custom_call.1} parent=19 // pred_fallthru
          _
        // Predicated region
        $region33: #{tpu_custom_call.1} parent=19 // pred_check
          %p292 = pneg %p161
        $region34: #{tpu_custom_call.1} parent=19 // pred_check_branch
          %294 = sbr.rel (%p292) target = $region36
        $region35: #{tpu_custom_call.1} parent=19 // pred_region
          %p295 = scmp.lt.s32.totalorder %s26, 1
          %s296 = scalar_select %p295, %s26, 1
          %s297 = smul.addr %s296, 4
          %s298 = smul.addr %s297, 4
          %s299 = scalar_lea.vmem %s4, %s298
        $region36: #{tpu_custom_call.1} parent=19 // pred_fallthru
          _
        // Predicated region
        $region37: #{tpu_custom_call.1} parent=19 // pred_check
          %p300 = pneg %p187
        $region38: #{tpu_custom_call.1} parent=19 // pred_check_branch
          %302 = sbr.rel (%p300) target = $region40
        $region39: #{tpu_custom_call.1} parent=19 // pred_region
          %p303 = scmp.lt.s32.totalorder %s26, 1
          %s304 = scalar_select %p303, %s26, 1
          %s305 = smul.addr %s304, 4
          %s306 = smul.addr %s305, 8
          %s307 = scalar_lea.vmem %s5, %s306
        $region40: #{tpu_custom_call.1} parent=19 // pred_fallthru
          _
      $region20: #{tpu_custom_call.1} parent=5 // pred_fallthru
        _
      %p308 = scmp.le.s32.totalorder 1, %s19
      %p309 = scmp.lt.s32.totalorder %s19, 5
      %p310 = pnand %p308, %p309
      %p311 = pneg %p310
      // Predicated region
      $region41: #{tpu_custom_call.1} parent=5 // pred_check
        _
      $region42: #{tpu_custom_call.1} parent=5 // pred_check_branch
        %313 = sbr.rel (%p310) target = $region44
      $region43: #{tpu_custom_call.1} parent=5 // pred_region
        %s314 = ssub.s32 %s19, 1
        // Predicated region
        $region45: #{tpu_custom_call.1} parent=43 // pred_check
          %p315 = pneg %p59
        $region46: #{tpu_custom_call.1} parent=43 // pred_check_branch
          %317 = sbr.rel (%p315) target = $region48
        $region47: #{tpu_custom_call.1} parent=43 // pred_region
          %318 = dma.done [#allocation5], 16
        $region48: #{tpu_custom_call.1} parent=43 // pred_fallthru
          _
        %s319 = sand.u32 %s76, 1
        %s320 = scalar_lea.sflag [#allocation3], %s319
        %s321 = sand.u32 %s76, 1
        %s322 = smul.addr %s321, 32
        %s323 = scalar_lea.vmem [#allocation6], %s322
        // Predicated region
        $region49: #{tpu_custom_call.1} parent=43 // pred_check
          %p324 = pneg %p89
        $region50: #{tpu_custom_call.1} parent=43 // pred_check_branch
          %326 = sbr.rel (%p324) target = $region52
        $region51: #{tpu_custom_call.1} parent=43 // pred_region
          %327 = dma.done %s320, 512
        $region52: #{tpu_custom_call.1} parent=43 // pred_fallthru
          _
        %328 = sfence
        %p329 = pneg %p59
        %p330 = pneg %p56
        %s331 = sand.u32 %s76, 1
        %s332 = scalar_lea.sflag [#allocation3], %s331
        %s333 = sand.u32 %s76, 1
        %s334 = smul.addr %s333, 32
        %s335 = scalar_lea.vmem [#allocation6], %s334
        %p336 = pneg %p89
        %p337 = pneg %p86
        %p338 = scmp.lt.s32.totalorder %s29, 1
        %s339 = scalar_select %p338, %s29, 1
        %s340 = smul.addr %s339, 4
        %s341 = scalar_lea.vmem %s2, %s340
        %p342 = pneg %p115
        %p343 = pneg %p112
        %p344 = scmp.lt.s32.totalorder %s29, 1
        %s345 = scalar_select %p344, %s29, 1
        %s346 = smul.addr %s345, 8
        %s347 = scalar_lea.vmem %s3, %s346
        %p348 = pneg %p141
        %p349 = pneg %p138
        %p350 = scmp.lt.s32.totalorder %s29, 1
        %s351 = scalar_select %p350, %s29, 1
        %s352 = smul.addr %s351, 4
        %s353 = smul.addr %s352, 4
        %s354 = scalar_lea.vmem %s4, %s353
        %p355 = pneg %p167
        %p356 = pneg %p164
        %p357 = scmp.lt.s32.totalorder %s29, 1
        %s358 = scalar_select %p357, %s29, 1
        %s359 = smul.addr %s358, 4
        %s360 = smul.addr %s359, 8
        %s361 = scalar_lea.vmem %s5, %s360
        %p362 = pneg %p193
        %p363 = pneg %p190
        %p364 = pneg %p223
        %p365 = pneg %p220
        %s366 = sand.u32 %s210, 1
        %s367 = scalar_lea.sflag [#allocation4], %s366
        %s368 = sand.u32 %s210, 1
        %s369 = smul.addr %s368, 32
        %s370 = scalar_lea.vmem [#allocation7], %s369
        %s371 = smul.u32 2, %s31
        %p372 = scmp.lt.s32.totalorder %s29, 1
        %s373 = scalar_select %p372, %s29, 1
        %s374 = smul.addr %s373, 4
        %s375 = scalar_lea.vmem %s2, %s374
        %p376 = scmp.lt.s32.totalorder %s29, 1
        %s377 = scalar_select %p376, %s29, 1
        %s378 = smul.addr %s377, 8
        %s379 = scalar_lea.vmem %s3, %s378
        %p380 = scmp.lt.s32.totalorder %s29, 1
        %s381 = scalar_select %p380, %s29, 1
        %s382 = smul.addr %s381, 4
        %s383 = smul.addr %s382, 4
        %s384 = scalar_lea.vmem %s4, %s383
        %p385 = scmp.lt.s32.totalorder %s29, 1
        %s386 = scalar_select %p385, %s29, 1
        %s387 = smul.addr %s386, 4
        %s388 = smul.addr %s387, 8
        %s389 = scalar_lea.vmem %s5, %s388
        %s390 = smul.u32 2, %s31
        %v392 = vld [vmem:[%s323] sm:$0xff]
        %v393 = vld [vmem:[%s323 + $0x8] sm:$0xff]
        %v394 = vld [vmem:[%s323 + $0x10] sm:$0xff]
        %v395 = vld [vmem:[%s323 + $0x18] sm:$0xff]
        %v396 = vld [vmem:[%s375] sm:$0xf]
        %v397 = vld [vmem:[%s379] sm:$0xff]
        %399 = vset.pattern.permute.xlu0 0
        %400 = vperm.xlu0 %399, %v397
        %v401 = vpop.permute.xlu0 %400
        %v407 = vunpack.c.l.b16 %v392
        %v408 = vunpack.c.h.b16 %v392
        %v409 = vunpack.c.l.b16 %v393
        %v410 = vunpack.c.h.b16 %v393
        %v411 = vunpack.c.l.b16 %v394
        %v412 = vunpack.c.h.b16 %v394
        %v413 = vunpack.c.l.b16 %v395
        %v414 = vunpack.c.h.b16 %v395
        %v415 = vpack.c.b16 %v409, %v407
        %v416 = vpack.c.b16 %v410, %v408
        %v417 = vpack.c.b16 %v413, %v411
        %v418 = vpack.c.b16 %v414, %v412
        %vm423 = vcmask 261120
        %v425 = vsel %vm423, %v396, 0
        %427 = vmatprep.subr.bf16.mxu0 0
        %428 = vmatpush1.bf16.msra.mxu0 0
        %429 = vmatprep.subr.bf16.mxu0 0
        %430 = vmatpush1.bf16.msra.mxu0 0
        %431 = vmatprep.subr.bf16.mxu0 0
        %432 = vmatpush1.bf16.msra.mxu0 0
        %433 = vmatprep.subr.bf16.mxu0 0
        %434 = vmatpush1.bf16.msra.mxu0 0
        %435 = vmatprep.subr.bf16.mxu0 0
        %436 = vmatpush1.bf16.msra.mxu0 0
        %437 = vmatprep.subr.bf16.mxu0 0
        %438 = vmatpush1.bf16.msra.mxu0 0
        %439 = vmatprep.subr.bf16.mxu0 %v418
        %440 = vmatpush1.bf16.msra.mxu0 %v417
        %441 = vmatprep.subr.bf16.mxu0 %v416
        %442 = vmatpush1.bf16.msra.mxu0 %v415
        %443 = vmatprep.subr.bf16.mxu0 0
        %444 = vmatpush2.bf16.msra.mxu0 0
        %445 = vmatprep.subr.bf16.mxu0 0
        %446 = vmatpush2.bf16.msra.mxu0 0
        %447 = vmatprep.subr.bf16.mxu0 0
        %448 = vmatpush2.bf16.msra.mxu0 0
        %449 = vmatprep.subr.bf16.mxu0 0
        %450 = vmatpush2.bf16.msra.mxu0 0
        %451 = vmatprep.subr.bf16.mxu0 0
        %452 = vmatpush2.bf16.msra.mxu0 0
        %453 = vmatprep.subr.bf16.mxu0 0
        %454 = vmatpush2.bf16.msra.mxu0 0
        %455 = vmatprep.subr.bf16.mxu0 0
        %456 = vmatpush2.bf16.msra.mxu0 0
        %457 = vmatprep.subr.bf16.mxu0 0
        %458 = vmatpush2.bf16.msra.mxu0 0
        %459 = vmatprep.mubr.bf16.mxu0 0
        %460 = vmatmul.mubr.bf16.gmra.mxu0 %v425
        %v461 = vpop.f32.mrf.mxu0
        %v462 = vadd.f32 %v401, %v461
        %v463 = vpop.f32.mrf.mxu0
        %v464 = vadd.f32 %v401, %v463
        %v465 = vpop.f32.mrf.mxu0
        %v466 = vpop.f32.mrf.mxu0
        %467 = vdwg.mxu0
        %v468 = vmax.f32 %v462, 0.0
        %v469 = vmax.f32 %v464, 0.0
        %v470 = vld [vmem:[%s384] sm:$0xf]
        %v471 = vld [vmem:[%s384 + $0x4] sm:$0xf]
        %v472 = vld [vmem:[%s384 + $0x8] sm:$0xf]
        %v473 = vld [vmem:[%s384 + $0xc] sm:$0xf]
        %v474 = vpack.c.bf16 %v468, %v468
        %v475 = vpack.c.bf16 %v469, %v469
        %v476 = vld [vmem:[%s389] sm:$0xff]
        %v477 = vld [vmem:[%s389 + $0x8] sm:$0xff]
        %v478 = vld [vmem:[%s389 + $0x10] sm:$0xff]
        %v479 = vld [vmem:[%s389 + $0x18] sm:$0xff]
        %481 = vset.pattern.permute.xlu0 0
        %482 = vperm.xlu0 %481, %v476
        %v483 = vpop.permute.xlu0 %482
        %486 = vset.pattern.permute.xlu0 0
        %487 = vperm.xlu0 %486, %v477
        %v488 = vpop.permute.xlu0 %487
        %491 = vset.pattern.permute.xlu0 0
        %492 = vperm.xlu0 %491, %v478
        %v493 = vpop.permute.xlu0 %492
        %496 = vset.pattern.permute.xlu0 0
        %497 = vperm.xlu0 %496, %v479
        %v498 = vpop.permute.xlu0 %497
        %v504 = vunpack.c.l.b16 %v470
        %v505 = vunpack.c.l.b16 %v471
        %v506 = vunpack.c.l.b16 %v472
        %v507 = vunpack.c.l.b16 %v473
        %v508 = vpack.c.b16 %v505, %v504
        %v509 = vpack.c.b16 %v507, %v506
        %vm510 = vcmask 64512
        %v512 = vsel %vm510, %v508, 0
        %v515 = vsel %vm510, %v509, 0
        %vm517 = vcmask 1043456
        %v519 = vsel %vm517, %v474, 0
        %v522 = vsel %vm517, %v475, 0
        %524 = vmatprep.subr.bf16.mxu0 0
        %525 = vmatpush1.bf16.msra.mxu0 0
        %526 = vmatprep.subr.bf16.mxu0 0
        %527 = vmatpush1.bf16.msra.mxu0 0
        %528 = vmatprep.subr.bf16.mxu0 0
        %529 = vmatpush1.bf16.msra.mxu0 0
        %530 = vmatprep.subr.bf16.mxu0 0
        %531 = vmatpush1.bf16.msra.mxu0 0
        %532 = vmatprep.subr.bf16.mxu0 0
        %533 = vmatpush1.bf16.msra.mxu0 0
        %534 = vmatprep.subr.bf16.mxu0 0
        %535 = vmatpush1.bf16.msra.mxu0 0
        %536 = vmatprep.subr.bf16.mxu0 0
        %537 = vmatpush1.bf16.msra.mxu0 0
        %538 = vmatprep.subr.bf16.mxu0 %v522
        %539 = vmatpush1.bf16.msra.mxu0 %v519
        %540 = vmatprep.subr.bf16.mxu0 0
        %541 = vmatpush2.bf16.msra.mxu0 0
        %542 = vmatprep.subr.bf16.mxu0 0
        %543 = vmatpush2.bf16.msra.mxu0 0
        %544 = vmatprep.subr.bf16.mxu0 0
        %545 = vmatpush2.bf16.msra.mxu0 0
        %546 = vmatprep.subr.bf16.mxu0 0
        %547 = vmatpush2.bf16.msra.mxu0 0
        %548 = vmatprep.subr.bf16.mxu0 0
        %549 = vmatpush2.bf16.msra.mxu0 0
        %550 = vmatprep.subr.bf16.mxu0 0
        %551 = vmatpush2.bf16.msra.mxu0 0
        %552 = vmatprep.subr.bf16.mxu0 0
        %553 = vmatpush2.bf16.msra.mxu0 0
        %554 = vmatprep.subr.bf16.mxu0 0
        %555 = vmatpush2.bf16.msra.mxu0 0
        %556 = vmatprep.mubr.bf16.mxu0 0
        %557 = vmatmul.mubr.bf16.gmra.mxu0 %v512
        %v558 = vpop.f32.mrf.mxu0
        %v559 = vadd.f32 %v483, %v558
        %v560 = vpop.f32.mrf.mxu0
        %v561 = vadd.f32 %v483, %v560
        %v562 = vpop.f32.mrf.mxu0
        %v563 = vadd.f32 %v488, %v562
        %v564 = vpop.f32.mrf.mxu0
        %v565 = vadd.f32 %v488, %v564
        %566 = vmatprep.mubr.bf16.mxu0 0
        %567 = vmatmul.mubr.bf16.gmra.mxu0 %v515
        %v568 = vpop.f32.mrf.mxu0
        %v569 = vadd.f32 %v493, %v568
        %v570 = vpop.f32.mrf.mxu0
        %v571 = vadd.f32 %v493, %v570
        %v572 = vpop.f32.mrf.mxu0
        %v573 = vadd.f32 %v498, %v572
        %v574 = vpop.f32.mrf.mxu0
        %v575 = vadd.f32 %v498, %v574
        %576 = vdwg.mxu0
        %s577 = sld [smem:[#allocation2 + %s29]]
        %v578 = vstv %s577
        %v579 = vmul.f32 %v578, %v559
        %v580 = vmul.f32 %v578, %v561
        %v581 = vmul.f32 %v578, %v563
        %v582 = vmul.f32 %v578, %v565
        %v583 = vmul.f32 %v578, %v569
        %v584 = vmul.f32 %v578, %v571
        %v585 = vmul.f32 %v578, %v573
        %v586 = vmul.f32 %v578, %v575
        %s587 = ssub.f32 1.0, %s577
        %v588 = vunpack.c.l.bf16 %v392
        %v589 = vunpack.c.h.bf16 %v392
        %v590 = vunpack.c.l.bf16 %v393
        %v591 = vunpack.c.h.bf16 %v393
        %v592 = vunpack.c.l.bf16 %v394
        %v593 = vunpack.c.h.bf16 %v394
        %v594 = vunpack.c.l.bf16 %v395
        %v595 = vunpack.c.h.bf16 %v395
        %v596 = vstv %s587
        %v597 = vmul.f32 %v596, %v588
        %v598 = vmul.f32 %v596, %v589
        %v599 = vmul.f32 %v596, %v590
        %v600 = vmul.f32 %v596, %v591
        %v601 = vmul.f32 %v596, %v592
        %v602 = vmul.f32 %v596, %v593
        %v603 = vmul.f32 %v596, %v594
        %v604 = vmul.f32 %v596, %v595
        %v605 = vadd.f32 %v579, %v597
        %v606 = vadd.f32 %v580, %v598
        %v607 = vadd.f32 %v581, %v599
        %v608 = vadd.f32 %v582, %v600
        %v609 = vadd.f32 %v583, %v601
        %v610 = vadd.f32 %v584, %v602
        %v611 = vadd.f32 %v585, %v603
        %v612 = vadd.f32 %v586, %v604
        %v613 = vpack.c.bf16 %v607, %v605
        %v614 = vpack.c.bf16 %v608, %v606
        %v615 = vpack.c.bf16 %v611, %v609
        %v616 = vpack.c.bf16 %v612, %v610
        %v621 = vunpack.c.l.b16 %v613
        %v622 = vunpack.c.l.b16 %v614
        %v623 = vunpack.c.h.b16 %v613
        %v624 = vunpack.c.h.b16 %v614
        %v625 = vunpack.c.l.b16 %v615
        %v626 = vunpack.c.l.b16 %v616
        %v627 = vunpack.c.h.b16 %v615
        %v628 = vunpack.c.h.b16 %v616
        %v629 = vpack.c.b16 %v622, %v621
        %v630 = vpack.c.b16 %v624, %v623
        %v631 = vpack.c.b16 %v626, %v625
        %v632 = vpack.c.b16 %v628, %v627
        %637 = vst [vmem:[%s370] sm:$0xff] %v629
        %638 = vst [vmem:[%s370 + $0x8] sm:$0xff] %v630
        %639 = vst [vmem:[%s370 + $0x10] sm:$0xff] %v631
        %640 = vst [vmem:[%s370 + $0x18] sm:$0xff] %v632
        %s641 = sand.u32 %s210, 1
        %s642 = scalar_lea.sflag [#allocation4], %s641
        %s643 = sand.u32 %s210, 1
        %s644 = smul.addr %s643, 32
        %s645 = scalar_lea.vmem [#allocation7], %s644
        // Predicated region
        $region53: #{tpu_custom_call.1} parent=43 // pred_check
          %p646 = pneg %p220
        $region54: #{tpu_custom_call.1} parent=43 // pred_check_branch
          %648 = sbr.rel (%p646) target = $region56
        $region55: #{tpu_custom_call.1} parent=43 // pred_region
          %s649 = smul.u32 2, %s31
          %s651 = ssub.s32 512, 512
          %652 = vsyncadd %s642, %s651
          %s653 = smul.addr %s30, 8
          %s654 = sadd.s32 %s649, %s653
          %s655 = smul.addr %s29, 16
          %s656 = sadd.s32 %s654, %s655
          %s657 = smul.addr %s656, 64
          %s658 = scalar_lea.hbm %s6, %s657
          %s659 = sshll.u32 %s645, 4
          %s660 = int_to_ptr.vmem [resolvable:$true] %s659
          %665 = dma.vmem_to_hbm [thread:$0]  %s660, 512, %s658, %s642, 128, 128, 8
        $region56: #{tpu_custom_call.1} parent=43 // pred_fallthru
          _
      $region44: #{tpu_custom_call.1} parent=5 // pred_fallthru
        _
      %p666 = scmp.le.s32.totalorder 2, %s19
      // Predicated region
      $region57: #{tpu_custom_call.1} parent=5 // pred_check
        %p667 = pneg %p666
      $region58: #{tpu_custom_call.1} parent=5 // pred_check_branch
        %669 = sbr.rel (%p667) target = $region60
      $region59: #{tpu_custom_call.1} parent=5 // pred_region
        %s670 = ssub.s32 %s19, 2
        // Predicated region
        $region61: #{tpu_custom_call.1} parent=59 // pred_check
          %p671 = pneg %p226
        $region62: #{tpu_custom_call.1} parent=59 // pred_check_branch
          %673 = sbr.rel (%p671) target = $region64
        $region63: #{tpu_custom_call.1} parent=59 // pred_region
          %s674 = sand.u32 %s211, 1
          %s675 = scalar_lea.sflag [#allocation4], %s674
          %s676 = sand.u32 %s211, 1
          %s677 = smul.addr %s676, 32
          %s678 = scalar_lea.vmem [#allocation7], %s677
          %679 = dma.done %s675, 512
        $region64: #{tpu_custom_call.1} parent=59 // pred_fallthru
          _
      $region60: #{tpu_custom_call.1} parent=5 // pred_fallthru
        _
    $region6: #{tpu_custom_call.1} parent=1 // loop_footer
      %s23 = sadd.s32 1, %s19
    $region7: #{tpu_custom_call.1} parent=1 // loop_footer_branch
      %18 = sbr.rel target = $region3
    $region8: #{tpu_custom_call.1} parent=1 // loop_exit
      _
    %680 = vsyncpa [#allocation3], 1
    %s681 = scalar_lea.sflag [#allocation3], 1
    %682 = vsyncpa %s681, 1
    %683 = vsyncpa [#allocation4], 1
    %s684 = scalar_lea.sflag [#allocation4], 1
    %685 = vsyncpa %s684, 1
    %686 = vsyncpa [#allocation5], 1
    %s687 = scalar_lea.sflag [#allocation5], 1
    %688 = vsyncpa %s687, 1

</llo_original>
